<compile_context>
chip_gen: v7x
topology: tpu7x:2x2x1
jax: 0.10.0
libtpu: 0.0.40
codegen_flags: <defaults>
</compile_context>

<pallas_src>
import functools

import jax
import jax.numpy as jnp
from jax.experimental import pallas as pl
from jax.experimental.pallas import tpu as pltpu

SIGMA = 1.0
INV_TWO_SIGMA_SQ = 1.0 / (2.0 * SIGMA * SIGMA)
_BIG = 1e30  # "+inf" distance for padded fact columns / accumulator init


def _round_up(x, m):
    return ((x + m - 1) // m) * m


# ----------------------------------------------------------------------------
# Fused NeuralKB Gaussian scoring + tnorm(min) thresholds + max over branches.
# Grid: (batch tiles, entity tiles, fact tiles); fact axis is the reduction.
# ----------------------------------------------------------------------------
def _nkb_kernel(q_ref, dz_ref, fcat_ref, dent_ref, out_ref, acc_ref, *, k):
    f_idx = pl.program_id(2)

    @pl.when(f_idx == 0)
    def _init():
        acc_ref[...] = jnp.full(acc_ref.shape, _BIG, dtype=acc_ref.dtype)

    q = q_ref[...]        # [K, TB, 2E]  queries = concat(hop_rel | source)
    dzv = dz_ref[...]     # [K, TB, 1]   per-branch distance thresholds
    fc = fcat_ref[...]    # [TF, 2E]     facts = concat(fact_rel | fact_arg)
    dent = dent_ref[...]  # [TN, TF]     precomputed ||ent-fe||^2 + ||fcat||^2

    acc = acc_ref[...]    # [TB, TN] running min over (branches, facts)
    for j in range(k):    # k is a small, static constant (1 or top-k)
        qj = q[j]                                             # [TB, 2E]
        qn = jnp.sum(qj * qj, axis=-1, keepdims=True)         # [TB, 1]
        cross = jax.lax.dot_general(
            qj, fc, (((1,), (1,)), ((), ())),
            preferred_element_type=jnp.float32)               # [TB, TF] (MXU)
        # ||q - fcat||^2 minus the ||fcat||^2 term (folded into dent).
        dq = qn - 2.0 * cross                                 # [TB, TF]
        tot = dq[:, None, :] + dent[None, :, :]               # [TB, TN, TF]
        m = jnp.min(tot, axis=-1)                             # min over facts
        m = jnp.maximum(m, dzv[j])                            # fused tnorm(min)
        acc = jnp.minimum(acc, m)                             # max over branches
    acc_ref[...] = acc

    @pl.when(f_idx == pl.num_programs(2) - 1)
    def _finalize():
        d = jnp.maximum(acc_ref[...], 0.0)        # clamp fp-rounding negatives
        out_ref[...] = jnp.exp(-INV_TWO_SIGMA_SQ * d)   # one exp per (b, n)


def _nkb_pallas(q, dz, fcat, dent, *, n_valid, tile_b=32, TN=256, TF=256):
    """q: [B, K, 2E] queries, dz: [B, K] thresholds, fcat: [Fp, 2E] (padded),
    dent: [Np, Fp] (padded, pad = _BIG).  Returns [B, n_valid] scores."""
    B, K, E2 = q.shape
    Fp = fcat.shape[0]
    Np = dent.shape[0]

    TB = min(tile_b, _round_up(B, 8))
    Bp = _round_up(B, TB)

    qT = jnp.transpose(q, (1, 0, 2))              # [K, B, 2E] branch-major
    dzT = jnp.transpose(dz)[:, :, None]           # [K, B, 1]
    if Bp != B:
        qT = jnp.pad(qT, ((0, 0), (0, Bp - B), (0, 0)))
        dzT = jnp.pad(dzT, ((0, 0), (0, Bp - B), (0, 0)))

    out = pl.pallas_call(
        functools.partial(_nkb_kernel, k=K),
        out_shape=jax.ShapeDtypeStruct((Bp, Np), jnp.float32),
        grid=(Bp // TB, Np // TN, Fp // TF),
        in_specs=[
            pl.BlockSpec((K, TB, E2), lambda b, n, f: (0, b, 0)),  # queries
            pl.BlockSpec((K, TB, 1), lambda b, n, f: (0, b, 0)),   # thresholds
            pl.BlockSpec((TF, E2), lambda b, n, f: (f, 0)),        # fact chunk
            pl.BlockSpec((TN, TF), lambda b, n, f: (n, f)),        # ent-fact dist
        ],
        out_specs=pl.BlockSpec((TB, TN), lambda b, n, f: (b, n)),
        scratch_shapes=[pltpu.VMEM((TB, TN), jnp.float32)],
        compiler_params=pltpu.CompilerParams(
            dimension_semantics=("parallel", "parallel", "arbitrary"),
            vmem_limit_bytes=48 * 1024 * 1024),   # ~25% headroom below v7x's 64MiB
    )(qT, dzT, fcat, dent)
    return out[:B, :n_valid]


# ----------------------------------------------------------------------------
# Batch-independent precompute (hoisted out of every kernel launch).
#   dent[n, f] = max(||ent_n - fe_f||^2, 0) + ||fcat_f||^2, padded with _BIG.
# ----------------------------------------------------------------------------
def _build_dent(ent, fe, fcat_raw, n_pad, f_pad):
    e2 = jnp.sum(ent * ent, axis=-1, keepdims=True)
    f2 = jnp.sum(fe * fe, axis=-1, keepdims=True)
    d = jnp.maximum(e2 + jnp.transpose(f2) - 2.0 * (ent @ fe.T), 0.0)
    d = d + jnp.sum(fcat_raw * fcat_raw, axis=-1)[None, :]
    return jnp.pad(d, ((0, n_pad - d.shape[0]), (0, f_pad - d.shape[1])),
                   constant_values=_BIG)


# ----------------------------------------------------------------------------
# NeuralKB.forward single-direction scores (convenience wrapper; k=1, dz=0).
# ----------------------------------------------------------------------------
def nkb_scores(rel, arg, fr, fx, fe, ent, *, tile_b=32, tile_n=256, tile_f=256):
    B, _ = rel.shape
    N = ent.shape[0]
    F = fr.shape[0]
    TN = min(tile_n, _round_up(N, 128)); Np = _round_up(N, TN)
    TF = min(tile_f, _round_up(F, 128)); Fp = _round_up(F, TF)
    fcat_raw = jnp.concatenate([fr, fx], axis=-1)
    fcat = jnp.pad(fcat_raw, ((0, Fp - F), (0, 0)))
    dent = _build_dent(ent, fe, fcat_raw, Np, Fp)
    q = jnp.concatenate([rel, arg], axis=-1)[:, None, :]
    dz = jnp.zeros((B, 1), jnp.float32)
    return _nkb_pallas(q, dz, fcat, dent, n_valid=N, tile_b=tile_b, TN=TN, TF=TF)


# ----------------------------------------------------------------------------
# Hoppy.forward: depth=1, one LinearReformulator rule (2 hops), tnorm='min',
# R=None, is_reversed=False.
# ----------------------------------------------------------------------------
def hoppy_forward(rel, arg1, arg2, facts, ent, params, k=10,
                  tile_b=32, tile_n=256, tile_f=256):
    fr, fa1, fa2 = facts
    B, E = rel.shape
    N = ent.shape[0]
    F = fr.shape[0]
    k = min(k, N)
    W1, b1, W2, b2 = params

    TN = min(tile_n, _round_up(N, 128)); Np = _round_up(N, TN)
    TF = min(tile_f, _round_up(F, 128)); Fp = _round_up(F, TF)

    # ---- batch-independent precompute (once per forward) --------------------
    fcat_sp_raw = jnp.concatenate([fr, fa1], axis=-1)   # sp: rel<->fr, arg1<->fa1
    fcat_po_raw = jnp.concatenate([fr, fa2], axis=-1)   # po: rel<->fr, arg2<->fa2
    fcat_sp = jnp.pad(fcat_sp_raw, ((0, Fp - F), (0, 0)))
    fcat_po = jnp.pad(fcat_po_raw, ((0, Fp - F), (0, 0)))
    dent_sp = _build_dent(ent, fa2, fcat_sp_raw, Np, Fp)   # entity <-> fa2
    dent_po = _build_dent(ent, fa1, fcat_po_raw, Np, Fp)   # entity <-> fa1

    # LinearReformulator hop projections (tiny; plain JAX).
    hop1 = rel @ W1.T + b1
    hop2 = rel @ W2.T + b2

    def run(q_bke, dz_bk, fcat, dent):
        return _nkb_pallas(q_bke, dz_bk, fcat, dent, n_valid=N,
                           tile_b=tile_b, TN=TN, TF=TF)

    # ---- depth 0 and first hop of depth 1, batched into one launch each -----
    q_sp = jnp.concatenate([jnp.concatenate([rel, arg1], -1),
                            jnp.concatenate([hop1, arg1], -1)], axis=0)[:, None, :]
    q_po = jnp.concatenate([jnp.concatenate([rel, arg2], -1),
                            jnp.concatenate([hop2, arg2], -1)], axis=0)[:, None, :]
    zeros2b = jnp.zeros((2 * B, 1), jnp.float32)
    s_sp = run(q_sp, zeros2b, fcat_sp, dent_sp)          # [2B, N]
    s_po = run(q_po, zeros2b, fcat_po, dent_po)          # [2B, N]
    sp0, z_sp = s_sp[:B], s_sp[B:]
    po0, z_po = s_po[:B], s_po[B:]

    # ---- top-k + embedding gather (plain JAX; no clean Pallas equivalent) ---
    # TODO(synk): torch.topk / F.embedding gather stay as jax.lax.top_k / jnp.take.
    z_sc_sp, z_idx_sp = jax.lax.top_k(z_sp, k)
    z_emb_sp = jnp.take(ent, z_idx_sp, axis=0)           # [B, k, E]
    z_sc_po, z_idx_po = jax.lax.top_k(z_po, k)
    z_emb_po = jnp.take(ent, z_idx_po, axis=0)

    # min(z, exp(-c*d)) == exp(-c*max(d, -log(z)/c)) : turn scores into dists.
    dz_sp = -jnp.log(jnp.maximum(z_sc_sp, 1e-30)) / INV_TWO_SIGMA_SQ
    dz_po = -jnp.log(jnp.maximum(z_sc_po, 1e-30)) / INV_TWO_SIGMA_SQ

    # ---- second hop, fused with tnorm(min) + max over the k branches --------
    hop2_b = jnp.broadcast_to(hop2[:, None, :], (B, k, E))
    q2_sp = jnp.concatenate([hop2_b, z_emb_sp], axis=-1)  # [B, k, 2E]
    sp1 = run(q2_sp, dz_sp, fcat_sp, dent_sp)             # [B, N]

    hop1_b = jnp.broadcast_to(hop1[:, None, :], (B, k, E))
    q2_po = jnp.concatenate([hop1_b, z_emb_po], axis=-1)
    po1 = run(q2_po, dz_po, fcat_po, dent_po)

    # ---- max over depths (r_forward) -----------------------------------------
    return jnp.maximum(sp0, sp1), jnp.maximum(po0, po1)


# ----------------------------------------------------------------------------
# Pure-JAX references (sanity checks only; follow the original exp-then-max).
# ----------------------------------------------------------------------------
def _ref_nkb(rel, arg, fr, fx, fe, ent):
    def sq(x, y):
        return jnp.sum((x[:, None, :] - y[None, :, :]) ** 2, axis=-1)
    d_q = sq(rel, fr) + sq(arg, fx)
    d_e = sq(ent, fe)
    tot = d_q[:, None, :] + d_e[None, :, :]
    return jnp.max(jnp.exp(-INV_TWO_SIGMA_SQ * tot), axis=-1)


def _ref_hoppy(rel, arg1, arg2, facts, ent, params, k):
    fr, fa1, fa2 = facts
    B, E = rel.shape
    N = ent.shape[0]
    k = min(k, N)
    W1, b1, W2, b2 = params
    hop1 = rel @ W1.T + b1
    hop2 = rel @ W2.T + b2

    sp0 = _ref_nkb(rel, arg1, fr, fa1, fa2, ent)
    po0 = _ref_nkb(rel, arg2, fr, fa2, fa1, ent)

    z_sp = _ref_nkb(hop1, arg1, fr, fa1, fa2, ent)
    zs, zi = jax.lax.top_k(z_sp, k)
    zemb = jnp.take(ent, zi, axis=0)
    hop2r = jnp.broadcast_to(hop2[:, None, :], (B, k, E)).reshape(-1, E)
    sp2 = _ref_nkb(hop2r, zemb.reshape(-1, E), fr, fa1, fa2, ent)
    sp1 = jnp.max(jnp.minimum(zs.reshape(-1)[:, None], sp2).reshape(B, k, N), axis=1)

    z_po = _ref_nkb(hop2, arg2, fr, fa2, fa1, ent)
    zs2, zi2 = jax.lax.top_k(z_po, k)
    zemb2 = jnp.take(ent, zi2, axis=0)
    hop1r = jnp.broadcast_to(hop1[:, None, :], (B, k, E)).reshape(-1, E)
    po2 = _ref_nkb(hop1r, zemb2.reshape(-1, E), fr, fa2, fa1, ent)
    po1 = jnp.max(jnp.minimum(zs2.reshape(-1)[:, None], po2).reshape(B, k, N), axis=1)

    return jnp.maximum(sp0, sp1), jnp.maximum(po0, po1)


if __name__ == "__main__":
    key = jax.random.PRNGKey(0)
    B, E, F_, N, K = 2, 32, 32, 16, 10
    ks = jax.random.split(key, 9)
    scale = 0.5
    rel = jax.random.normal(ks[0], (B, E), jnp.float32) * scale
    arg1 = jax.random.normal(ks[1], (B, E), jnp.float32) * scale
    arg2 = jax.random.normal(ks[2], (B, E), jnp.float32) * scale
    fact_rel = jax.random.normal(ks[3], (F_, E), jnp.float32) * scale
    fact_arg1 = jax.random.normal(ks[4], (F_, E), jnp.float32) * scale
    fact_arg2 = jax.random.normal(ks[5], (F_, E), jnp.float32) * scale
    ent = jax.random.normal(ks[6], (N, E), jnp.float32) * scale

    # Deterministic LinearReformulator parameters (two Linear(E, E) hops).
    W1 = jax.random.normal(ks[7], (E, E), jnp.float32) / jnp.sqrt(E)
    b1 = jnp.zeros((E,), jnp.float32)
    W2 = jax.random.normal(ks[8], (E, E), jnp.float32) / jnp.sqrt(E)
    b2 = jnp.zeros((E,), jnp.float32)

    facts = (fact_rel, fact_arg1, fact_arg2)
    params = (W1, b1, W2, b2)

    # --- unit check: fused Pallas NKB kernel vs pure-JAX reference -----------
    got = nkb_scores(rel, arg1, fact_rel, fact_arg1, fact_arg2, ent)
    want = _ref_nkb(rel, arg1, fact_rel, fact_arg1, fact_arg2, ent)
    assert jnp.allclose(got, want, atol=1e-4, rtol=1e-4), "nkb kernel mismatch"

    # --- full Hoppy forward (jitted) vs pure-JAX reference --------------------
    fwd = jax.jit(functools.partial(hoppy_forward, k=K))
    res_sp, res_po = fwd(rel, arg1, arg2, facts, ent, params)
    jax.block_until_ready((res_sp, res_po))
    ref_sp, ref_po = _ref_hoppy(rel, arg1, arg2, facts, ent, params, K)
    assert res_sp.shape == (B, N) and res_po.shape == (B, N)
    assert jnp.allclose(res_sp, ref_sp, atol=2e-4, rtol=2e-4), "res_sp mismatch"
    assert jnp.allclose(res_po, ref_po, atol=2e-4, rtol=2e-4), "res_po mismatch"

    print("KERNEL_OK")
</pallas_src>

<mosaic_0001>
module attributes {stable_mosaic.version = 11 : i64} {
  func.func @_nkb_kernel(%arg0: i32, %arg1: i32, %arg2: i32, %arg3: memref<1x8x64xf32, #tpu.memory_space<vmem>>, %arg4: memref<1x8x1xf32, #tpu.memory_space<vmem>>, %arg5: memref<128x64xf32, #tpu.memory_space<vmem>>, %arg6: memref<128x128xf32, #tpu.memory_space<vmem>>, %arg7: memref<8x128xf32, #tpu.memory_space<vmem>>, %arg8: memref<8x128xf32, #tpu.memory_space<vmem>>) attributes {dimension_semantics = [#tpu.dimension_semantics<parallel>, #tpu.dimension_semantics<parallel>, #tpu.dimension_semantics<arbitrary>], iteration_bounds = array<i64: 1, 1, 1>, scalar_prefetch = 0 : i64, scratch_operands = 1 : i64, tpu.core_type = #tpu.core_type<tc>, window_params = [{transform_indices = @transform_0, window_bounds = array<i64: 1, 8, 64>}, {transform_indices = @transform_1, window_bounds = array<i64: 1, 8, 1>}, {transform_indices = @transform_2, window_bounds = array<i64: 128, 64>}, {transform_indices = @transform_3, window_bounds = array<i64: 128, 128>}, {transform_indices = @transform_4, window_bounds = array<i64: 8, 128>}]} {
    %c0_i32 = arith.constant 0 : i32
    %0 = arith.cmpi eq, %arg2, %c0_i32 : i32
    %1 = arith.extui %0 : i1 to i32
    %c0_i32_0 = arith.constant 0 : i32
    %2 = arith.cmpi ne, %1, %c0_i32_0 : i32
    scf.if %2 {
      %cst_19 = arith.constant 1.000000e+30 : f32
      %31 = vector.broadcast %cst_19 : f32 to vector<8x128xf32>
      %c0_20 = arith.constant 0 : index
      %c0_21 = arith.constant 0 : index
      %32 = vector.load %arg8[%c0_20, %c0_21] : memref<8x128xf32, #tpu.memory_space<vmem>>, vector<8x128xf32>
      tpu.vector_store %arg8[%c0_20, %c0_21], %31 {strides = array<i32>} : memref<8x128xf32, #tpu.memory_space<vmem>>, vector<8x128xf32>,
    } else {
    }
    %c0 = arith.constant 0 : index
    %c0_1 = arith.constant 0 : index
    %c0_2 = arith.constant 0 : index
    %3 = vector.load %arg3[%c0, %c0_1, %c0_2] : memref<1x8x64xf32, #tpu.memory_space<vmem>>, vector<1x8x64xf32>
    %c0_3 = arith.constant 0 : index
    %c0_4 = arith.constant 0 : index
    %c0_5 = arith.constant 0 : index
    %4 = vector.load %arg4[%c0_3, %c0_4, %c0_5] : memref<1x8x1xf32, #tpu.memory_space<vmem>>, vector<1x8x1xf32>
    %c0_6 = arith.constant 0 : index
    %c0_7 = arith.constant 0 : index
    %5 = vector.load %arg5[%c0_6, %c0_7] : memref<128x64xf32, #tpu.memory_space<vmem>>, vector<128x64xf32>
    %c0_8 = arith.constant 0 : index
    %c0_9 = arith.constant 0 : index
    %6 = vector.load %arg6[%c0_8, %c0_9] : memref<128x128xf32, #tpu.memory_space<vmem>>, vector<128x128xf32>
    %c0_10 = arith.constant 0 : index
    %c0_11 = arith.constant 0 : index
    %7 = vector.load %arg8[%c0_10, %c0_11] : memref<8x128xf32, #tpu.memory_space<vmem>>, vector<8x128xf32>
    %8 = vector.shape_cast %3 : vector<1x8x64xf32> to vector<8x64xf32>
    %9 = arith.mulf %8, %8 : vector<8x64xf32>
    %cst = arith.constant dense<0.000000e+00> : vector<8xf32>
    %10 = vector.multi_reduction <add>, %9, %cst [1] : vector<8x64xf32> to vector<8xf32>
    %11 = vector.shape_cast %10 : vector<8xf32> to vector<8x1xf32>
    %cst_12 = arith.constant dense<0.000000e+00> : vector<8x128xf32>
    %12 = tpu.matmul %8, %5, %cst_12 {dimension_numbers = #tpu.dot_dimension_numbers<[1], [1], [0], [0], [0, 0, 1, 0], [], []>} : vector<8x64xf32>, vector<128x64xf32>, vector<8x128xf32> -> vector<8x128xf32>
    %cst_13 = arith.constant 2.000000e+00 : f32
    %13 = vector.broadcast %cst_13 : f32 to vector<8x128xf32>
    %14 = arith.mulf %13, %12 : vector<8x128xf32>
    %15 = vector.broadcast %11 : vector<8x1xf32> to vector<8x128xf32>
    %16 = arith.subf %15, %14 : vector<8x128xf32>
    %17 = vector.shape_cast %16 : vector<8x128xf32> to vector<8x1x128xf32>
    %18 = vector.shape_cast %6 : vector<128x128xf32> to vector<1x128x128xf32>
    %19 = vector.broadcast %17 : vector<8x1x128xf32> to vector<8x128x128xf32>
    %20 = vector.broadcast %18 : vector<1x128x128xf32> to vector<8x128x128xf32>
    %21 = arith.addf %19, %20 : vector<8x128x128xf32>
    %cst_14 = arith.constant dense<0x7F800000> : vector<8x128xf32>
    %22 = vector.multi_reduction <minimumf>, %21, %cst_14 [2] : vector<8x128x128xf32> to vector<8x128xf32>
    %23 = vector.shape_cast %4 : vector<1x8x1xf32> to vector<8x1xf32>
    %24 = vector.broadcast %23 : vector<8x1xf32> to vector<8x128xf32>
    %25 = arith.maximumf %22, %24 : vector<8x128xf32>
    %26 = arith.minimumf %7, %25 : vector<8x128xf32>
    %c0_15 = arith.constant 0 : index
    %c0_16 = arith.constant 0 : index
    %27 = vector.load %arg8[%c0_15, %c0_16] : memref<8x128xf32, #tpu.memory_space<vmem>>, vector<8x128xf32>
    tpu.vector_store %arg8[%c0_15, %c0_16], %26 {strides = array<i32>} : memref<8x128xf32, #tpu.memory_space<vmem>>, vector<8x128xf32>,
    %c0_i32_17 = arith.constant 0 : i32
    %28 = arith.cmpi eq, %arg2, %c0_i32_17 : i32
    %29 = arith.extui %28 : i1 to i32
    %c0_i32_18 = arith.constant 0 : i32
    %30 = arith.cmpi ne, %29, %c0_i32_18 : i32
    scf.if %30 {
      %c0_19 = arith.constant 0 : index
      %c0_20 = arith.constant 0 : index
      %31 = vector.load %arg8[%c0_19, %c0_20] : memref<8x128xf32, #tpu.memory_space<vmem>>, vector<8x128xf32>
      %cst_21 = arith.constant 0.000000e+00 : f32
      %32 = vector.broadcast %cst_21 : f32 to vector<8x128xf32>
      %33 = arith.maximumf %31, %32 : vector<8x128xf32>
      %cst_22 = arith.constant -5.000000e-01 : f32
      %34 = vector.broadcast %cst_22 : f32 to vector<8x128xf32>
      %35 = arith.mulf %34, %33 : vector<8x128xf32>
      %36 = math.exp %35 : vector<8x128xf32>
      %c0_23 = arith.constant 0 : index
      %c0_24 = arith.constant 0 : index
      %37 = vector.load %arg7[%c0_23, %c0_24] : memref<8x128xf32, #tpu.memory_space<vmem>>, vector<8x128xf32>
      tpu.vector_store %arg7[%c0_23, %c0_24], %36 {strides = array<i32>} : memref<8x128xf32, #tpu.memory_space<vmem>>, vector<8x128xf32>,
    } else {
    }
    return
  }
  func.func @transform_0(%arg0: i32, %arg1: i32, %arg2: i32) -> (i32, i32, i32) {
    %c0_i32 = arith.constant 0 : i32
    %c0_i32_0 = arith.constant 0 : i32
    %c0_i32_1 = arith.constant 0 : i32
    return %c0_i32, %arg0, %c0_i32_0 : i32, i32, i32
  }
  func.func @transform_1(%arg0: i32, %arg1: i32, %arg2: i32) -> (i32, i32, i32) {
    %c0_i32 = arith.constant 0 : i32
    %c0_i32_0 = arith.constant 0 : i32
    %c0_i32_1 = arith.constant 0 : i32
    return %c0_i32, %arg0, %c0_i32_0 : i32, i32, i32
  }
  func.func @transform_2(%arg0: i32, %arg1: i32, %arg2: i32) -> (i32, i32) {
    %c0_i32 = arith.constant 0 : i32
    %c0_i32_0 = arith.constant 0 : i32
    return %arg2, %c0_i32 : i32, i32
  }
  func.func @transform_3(%arg0: i32, %arg1: i32, %arg2: i32) -> (i32, i32) {
    %c0_i32 = arith.constant 0 : i32
    return %arg1, %arg2 : i32, i32
  }
  func.func @transform_4(%arg0: i32, %arg1: i32, %arg2: i32) -> (i32, i32) {
    %c0_i32 = arith.constant 0 : i32
    return %arg0, %arg1 : i32, i32
  }
}

</mosaic_0001>

<llo_original>
// kernel: tpu_custom_call.1
$region0: #{tpu_custom_call.1}
  #allocation0 [shape = 'u32[]', space=smem, size = 0x4, offset = 0x4, fixed_abs, tag = 'smem constant byte address 0x4 - core index']
  #allocation1 [shape = 'u32[144,128]{1,0:T(1,128)}', space=vmem, size = 0x12000, scoped, tag = 'internal scratch']
  #allocation2 [shape = 'f32[8,128]{1,0:T(8,128)}', space=vmem, size = 0x1000, scoped, tag = 'scratch operand']
  %s0 = inlined_call_operand.vmem [shape: f32[1,8,64], index: 0, kind: input, shape index: {}]
  %s1 = inlined_call_operand.vmem [shape: f32[1,8,1], index: 1, kind: input, shape index: {}]
  %s2 = inlined_call_operand.vmem [shape: f32[128,64], index: 2, kind: input, shape index: {}]
  %s3 = inlined_call_operand.vmem [shape: f32[128,128], index: 3, kind: input, shape index: {}]
  %s4 = inlined_call_operand.hbm [shape: f32[8,128], index: 4, kind: output, shape index: {}]
  %s5 = sld [smem:[#allocation0]]
  $region34: #{tpu_custom_call.1} parent=0
    _
  %s7 = ssub.s32 1, %s5
  %s8 = scalar_select 0, %s7, %s5
  $region1: #{tpu_custom_call.1} parent=0
    #allocation3 [shape = 'u8[4096]{0}', space=vmem, size = 0x1000, scoped, tag = 'output window, operand 0, single buffered']
    #allocation4 [shape = 's32[1]{0}', space=sflag, size = 0x4, scoped, tag = 'scoped memory for tpu_custom_call.1']
    %9 = vsyncpa [#allocation4], 0
    // Predicated region
    $region2: #{tpu_custom_call.1} parent=1 // pred_check
      _
    $region3: #{tpu_custom_call.1} parent=1 // pred_check_branch
      %11 = sbr.rel (0) target = $region5
    $region4: #{tpu_custom_call.1} parent=1 // pred_region
      _
    $region5: #{tpu_custom_call.1} parent=1 // pred_fallthru
      _
    // Predicated region
    $region6: #{tpu_custom_call.1} parent=1 // pred_check
      _
    $region7: #{tpu_custom_call.1} parent=1 // pred_check_branch
      %13 = sbr.rel (0) target = $region9
    $region8: #{tpu_custom_call.1} parent=1 // pred_region
      _
    $region9: #{tpu_custom_call.1} parent=1 // pred_fallthru
      _
    // Predicated region
    $region10: #{tpu_custom_call.1} parent=1 // pred_check
      _
    $region11: #{tpu_custom_call.1} parent=1 // pred_check_branch
      %15 = sbr.rel (0) target = $region13
    $region12: #{tpu_custom_call.1} parent=1 // pred_region
      _
    $region13: #{tpu_custom_call.1} parent=1 // pred_fallthru
      _
    // Predicated region
    $region14: #{tpu_custom_call.1} parent=1 // pred_check
      _
    $region15: #{tpu_custom_call.1} parent=1 // pred_check_branch
      %17 = sbr.rel (0) target = $region17
    $region16: #{tpu_custom_call.1} parent=1 // pred_region
      _
    $region17: #{tpu_custom_call.1} parent=1 // pred_fallthru
      _
    %p18 = scmp.eq.s32.totalorder 0, 0
    // Predicated region
    $region18: #{tpu_custom_call.1} parent=1 // pred_check
      %p19 = pneg %p18
    $region19: #{tpu_custom_call.1} parent=1 // pred_check_branch
      %21 = sbr.rel (%p19) target = $region21
    $region20: #{tpu_custom_call.1} parent=1 // pred_region
      %22 = vst [vmem:[#allocation2] sm:$0xff] 1e+30
    $region21: #{tpu_custom_call.1} parent=1 // pred_fallthru
      _
    %v23 = vld [vmem:[%s0] sm:$0xff]
    %v24 = vld [vmem:[%s1] sm:$0xff]
    %v25 = vld [vmem:[%s2] sm:$0xff]
    %v26 = vld [vmem:[%s2 + $0x8] sm:$0xff]
    %v27 = vld [vmem:[%s2 + $0x10] sm:$0xff]
    %v28 = vld [vmem:[%s2 + $0x18] sm:$0xff]
    %v29 = vld [vmem:[%s2 + $0x20] sm:$0xff]
    %v30 = vld [vmem:[%s2 + $0x28] sm:$0xff]
    %v31 = vld [vmem:[%s2 + $0x30] sm:$0xff]
    %v32 = vld [vmem:[%s2 + $0x38] sm:$0xff]
    %v33 = vld [vmem:[%s2 + $0x40] sm:$0xff]
    %v34 = vld [vmem:[%s2 + $0x48] sm:$0xff]
    %v35 = vld [vmem:[%s2 + $0x50] sm:$0xff]
    %v36 = vld [vmem:[%s2 + $0x58] sm:$0xff]
    %v37 = vld [vmem:[%s2 + $0x60] sm:$0xff]
    %v38 = vld [vmem:[%s2 + $0x68] sm:$0xff]
    %v39 = vld [vmem:[%s2 + $0x70] sm:$0xff]
    %v40 = vld [vmem:[%s2 + $0x78] sm:$0xff]
    %v41 = vld [vmem:[%s3] sm:$0xff]
    %v42 = vld [vmem:[%s3 + $0x8] sm:$0xff]
    %v43 = vld [vmem:[%s3 + $0x10] sm:$0xff]
    %v44 = vld [vmem:[%s3 + $0x18] sm:$0xff]
    %v45 = vld [vmem:[%s3 + $0x20] sm:$0xff]
    %v46 = vld [vmem:[%s3 + $0x28] sm:$0xff]
    %v47 = vld [vmem:[%s3 + $0x30] sm:$0xff]
    %v48 = vld [vmem:[%s3 + $0x38] sm:$0xff]
    %v49 = vld [vmem:[%s3 + $0x40] sm:$0xff]
    %v50 = vld [vmem:[%s3 + $0x48] sm:$0xff]
    %v51 = vld [vmem:[%s3 + $0x50] sm:$0xff]
    %v52 = vld [vmem:[%s3 + $0x58] sm:$0xff]
    %v53 = vld [vmem:[%s3 + $0x60] sm:$0xff]
    %v54 = vld [vmem:[%s3 + $0x68] sm:$0xff]
    %v55 = vld [vmem:[%s3 + $0x70] sm:$0xff]
    %v56 = vld [vmem:[%s3 + $0x78] sm:$0xff]
    %v57 = vld [vmem:[#allocation2] sm:$0xff]
    %v58 = vmul.f32 %v23, %v23
    %vm59 = vcmask 523264
    %v60 = vsel %vm59, %v58, 0.0
    %61 = vadd.xlane.f32.xlu0 %v60
    %v62 = vpop.xlane.xlu0 %61
    %v64 = vsel %vm59, %v23, 0
    %v67 = vsel %vm59, %v25, 0
    %v70 = vsel %vm59, %v26, 0
    %v73 = vsel %vm59, %v27, 0
    %v76 = vsel %vm59, %v28, 0
    %v79 = vsel %vm59, %v29, 0
    %v82 = vsel %vm59, %v30, 0
    %v85 = vsel %vm59, %v31, 0
    %v88 = vsel %vm59, %v32, 0
    %v91 = vsel %vm59, %v33, 0
    %v94 = vsel %vm59, %v34, 0
    %v97 = vsel %vm59, %v35, 0
    %v100 = vsel %vm59, %v36, 0
    %v103 = vsel %vm59, %v37, 0
    %v106 = vsel %vm59, %v38, 0
    %v109 = vsel %vm59, %v39, 0
    %v112 = vsel %vm59, %v40, 0
    %114 = vmatprep.subr.mxu0 0.0
    %115 = vmatpush1.xpose.msra.mxu0 %v67
    %116 = vmatprep.subr.mxu0 0.0
    %117 = vmatpush1.xpose.msra.mxu0 %v70
    %118 = vmatprep.subr.mxu0 0.0
    %119 = vmatpush1.xpose.msra.mxu0 %v73
    %120 = vmatprep.subr.mxu0 0.0
    %121 = vmatpush1.xpose.msra.mxu0 %v76
    %122 = vmatprep.subr.mxu0 0.0
    %123 = vmatpush1.xpose.msra.mxu0 %v79
    %124 = vmatprep.subr.mxu0 0.0
    %125 = vmatpush1.xpose.msra.mxu0 %v82
    %126 = vmatprep.subr.mxu0 0.0
    %127 = vmatpush1.xpose.msra.mxu0 %v85
    %128 = vmatprep.subr.mxu0 0.0
    %129 = vmatpush1.xpose.msra.mxu0 %v88
    %130 = vmatprep.subr.mxu0 0.0
    %131 = vmatpush1.xpose.msra.mxu0 %v91
    %132 = vmatprep.subr.mxu0 0.0
    %133 = vmatpush1.xpose.msra.mxu0 %v94
    %134 = vmatprep.subr.mxu0 0.0
    %135 = vmatpush1.xpose.msra.mxu0 %v97
    %136 = vmatprep.subr.mxu0 0.0
    %137 = vmatpush1.xpose.msra.mxu0 %v100
    %138 = vmatprep.subr.mxu0 0.0
    %139 = vmatpush1.xpose.msra.mxu0 %v103
    %140 = vmatprep.subr.mxu0 0.0
    %141 = vmatpush1.xpose.msra.mxu0 %v106
    %142 = vmatprep.subr.mxu0 0.0
    %143 = vmatpush1.xpose.msra.mxu0 %v109
    %144 = vmatprep.subr.mxu0 0.0
    %145 = vmatpush1.xpose.msra.mxu0 %v112
    %146 = vmatprep.subr.mxu0 0.0
    %147 = vmatpush1.xpose.msra.mxu0 0.0
    %148 = vmatprep.subr.mxu0 0.0
    %149 = vmatpush1.xpose.msra.mxu0 0.0
    %150 = vmatprep.subr.mxu0 0.0
    %151 = vmatpush1.xpose.msra.mxu0 0.0
    %152 = vmatprep.subr.mxu0 0.0
    %153 = vmatpush1.xpose.msra.mxu0 0.0
    %154 = vmatprep.subr.mxu0 0.0
    %155 = vmatpush1.xpose.msra.mxu0 0.0
    %156 = vmatprep.subr.mxu0 0.0
    %157 = vmatpush1.xpose.msra.mxu0 0.0
    %158 = vmatprep.subr.mxu0 0.0
    %159 = vmatpush1.xpose.msra.mxu0 0.0
    %160 = vmatprep.subr.mxu0 0.0
    %161 = vmatpush1.xpose.msra.mxu0 0.0
    %162 = vmatprep.subr.mxu0 0.0
    %163 = vmatpush1.xpose.msra.mxu0 0.0
    %164 = vmatprep.subr.mxu0 0.0
    %165 = vmatpush1.xpose.msra.mxu0 0.0
    %166 = vmatprep.subr.mxu0 0.0
    %167 = vmatpush1.xpose.msra.mxu0 0.0
    %168 = vmatprep.subr.mxu0 0.0
    %169 = vmatpush1.xpose.msra.mxu0 0.0
    %170 = vmatprep.subr.mxu0 0.0
    %171 = vmatpush1.xpose.msra.mxu0 0.0
    %172 = vmatprep.subr.mxu0 0.0
    %173 = vmatpush1.xpose.msra.mxu0 0.0
    %174 = vmatprep.subr.mxu0 0.0
    %175 = vmatpush1.xpose.msra.mxu0 0.0
    %176 = vmatprep.subr.mxu0 0.0
    %177 = vmatpush1.xpose.msra.mxu0 0.0
    %178 = vmatprep.mubr.f32.mxu0 0.0
    %179 = vmatmul.mubr.f32.gmra.mrb[0].mxu0 %v64
    %v180 = vpop.f32.mrb[0].mxu0
    %v181 = vadd.f32 0.0, %v180
    %v182 = vpop.f32.mrb[0].mxu0
    %183 = vdwg.mxu0
    %v184 = vmul.f32 %v181, 2.0
    %v185 = vsub.f32 %v62, %v184
    %v187 = vcombine.high %v185, %v185
    %v189 = vunpack.c.l.s4 1966171168
    %v190 = vunpack.c.0.s8 %v189
    %v191 = vlaneseq
    %v192 = vshrl.u32 %v191, 7
    %v193 = vsub.s32 %v190, %v192
    %v194 = vrot.slane %v185, %v193
    %v196 = vunpack.c.l.s4 1966171168
    %v197 = vunpack.c.0.s8 %v196
    %v198 = vlaneseq
    %v199 = vshrl.u32 %v198, 7
    %v200 = vsub.s32 %v197, %v199
    %v201 = vrot.slane %v187, %v200
    %v202 = vcombine.high %v194, %v194
    %v203 = vcombine.high %v201, %v201
    %v205 = vunpack.c.l.s4 1966171168
    %v206 = vunpack.c.0.s8 %v205
    %v207 = vlaneseq
    %v208 = vshrl.u32 %v207, 7
    %v209 = vsub.s32 %v206, %v208
    %v210 = vrot.slane %v194, %v209
    %v212 = vunpack.c.l.s4 1966171168
    %v213 = vunpack.c.0.s8 %v212
    %v214 = vlaneseq
    %v215 = vshrl.u32 %v214, 7
    %v216 = vsub.s32 %v213, %v215
    %v217 = vrot.slane %v201, %v216
    %v219 = vunpack.c.l.s4 1966171168
    %v220 = vunpack.c.0.s8 %v219
    %v221 = vlaneseq
    %v222 = vshrl.u32 %v221, 7
    %v223 = vsub.s32 %v220, %v222
    %v224 = vrot.slane %v202, %v223
    %v226 = vunpack.c.l.s4 1966171168
    %v227 = vunpack.c.0.s8 %v226
    %v228 = vlaneseq
    %v229 = vshrl.u32 %v228, 7
    %v230 = vsub.s32 %v227, %v229
    %v231 = vrot.slane %v203, %v230
    %v232 = vcombine.high %v210, %v210
    %v233 = vcombine.high %v217, %v217
    %v234 = vcombine.high %v224, %v224
    %v235 = vcombine.high %v231, %v231
    %v236 = vlaneseq
    %v237 = vshrl.u32 %v236, 7
    %v238 = vsub.s32 0, %v237
    %v239 = vrot.slane %v210, %v238
    %v240 = vlaneseq
    %v241 = vshrl.u32 %v240, 7
    %v242 = vsub.s32 0, %v241
    %v243 = vrot.slane %v224, %v242
    %v244 = vlaneseq
    %v245 = vshrl.u32 %v244, 7
    %v246 = vsub.s32 0, %v245
    %v247 = vrot.slane %v232, %v246
    %v248 = vlaneseq
    %v249 = vshrl.u32 %v248, 7
    %v250 = vsub.s32 0, %v249
    %v251 = vrot.slane %v234, %v250
    %v252 = vlaneseq
    %v253 = vshrl.u32 %v252, 7
    %v254 = vsub.s32 0, %v253
    %v255 = vrot.slane %v217, %v254
    %v256 = vlaneseq
    %v257 = vshrl.u32 %v256, 7
    %v258 = vsub.s32 0, %v257
    %v259 = vrot.slane %v231, %v258
    %v260 = vlaneseq
    %v261 = vshrl.u32 %v260, 7
    %v262 = vsub.s32 0, %v261
    %v263 = vrot.slane %v233, %v262
    %v264 = vlaneseq
    %v265 = vshrl.u32 %v264, 7
    %v266 = vsub.s32 0, %v265
    %v267 = vrot.slane %v235, %v266
    %v276 = vadd.f32 %v239, %v41
    %v277 = vadd.f32 %v239, %v42
    %v278 = vadd.f32 %v239, %v43
    %v279 = vadd.f32 %v239, %v44
    %v280 = vadd.f32 %v239, %v45
    %v281 = vadd.f32 %v239, %v46
    %v282 = vadd.f32 %v239, %v47
    %v283 = vadd.f32 %v239, %v48
    %v284 = vadd.f32 %v239, %v49
    %v285 = vadd.f32 %v239, %v50
    %v286 = vadd.f32 %v239, %v51
    %v287 = vadd.f32 %v239, %v52
    %v288 = vadd.f32 %v239, %v53
    %v289 = vadd.f32 %v239, %v54
    %v290 = vadd.f32 %v239, %v55
    %v291 = vadd.f32 %v239, %v56
    %v292 = vadd.f32 %v243, %v41
    %v293 = vadd.f32 %v243, %v42
    %v294 = vadd.f32 %v243, %v43
    %v295 = vadd.f32 %v243, %v44
    %v296 = vadd.f32 %v243, %v45
    %v297 = vadd.f32 %v243, %v46
    %v298 = vadd.f32 %v243, %v47
    %v299 = vadd.f32 %v243, %v48
    %v300 = vadd.f32 %v243, %v49
    %v301 = vadd.f32 %v243, %v50
    %v302 = vadd.f32 %v243, %v51
    %v303 = vadd.f32 %v243, %v52
    %v304 = vadd.f32 %v243, %v53
    %v305 = vadd.f32 %v243, %v54
    %v306 = vadd.f32 %v243, %v55
    %v307 = vadd.f32 %v243, %v56
    %v308 = vadd.f32 %v247, %v41
    %v309 = vadd.f32 %v247, %v42
    %v310 = vadd.f32 %v247, %v43
    %v311 = vadd.f32 %v247, %v44
    %v312 = vadd.f32 %v247, %v45
    %v313 = vadd.f32 %v247, %v46
    %v314 = vadd.f32 %v247, %v47
    %v315 = vadd.f32 %v247, %v48
    %v316 = vadd.f32 %v247, %v49
    %v317 = vadd.f32 %v247, %v50
    %v318 = vadd.f32 %v247, %v51
    %v319 = vadd.f32 %v247, %v52
    %v320 = vadd.f32 %v247, %v53
    %v321 = vadd.f32 %v247, %v54
    %v322 = vadd.f32 %v247, %v55
    %v323 = vadd.f32 %v247, %v56
    %v324 = vadd.f32 %v251, %v41
    %v325 = vadd.f32 %v251, %v42
    %v326 = vadd.f32 %v251, %v43
    %v327 = vadd.f32 %v251, %v44
    %v328 = vadd.f32 %v251, %v45
    %v329 = vadd.f32 %v251, %v46
    %v330 = vadd.f32 %v251, %v47
    %v331 = vadd.f32 %v251, %v48
    %v332 = vadd.f32 %v251, %v49
    %v333 = vadd.f32 %v251, %v50
    %v334 = vadd.f32 %v251, %v51
    %v335 = vadd.f32 %v251, %v52
    %v336 = vadd.f32 %v251, %v53
    %v337 = vadd.f32 %v251, %v54
    %v338 = vadd.f32 %v251, %v55
    %v339 = vadd.f32 %v251, %v56
    %v340 = vadd.f32 %v255, %v41
    %v341 = vadd.f32 %v255, %v42
    %v342 = vadd.f32 %v255, %v43
    %v343 = vadd.f32 %v255, %v44
    %v344 = vadd.f32 %v255, %v45
    %v345 = vadd.f32 %v255, %v46
    %v346 = vadd.f32 %v255, %v47
    %v347 = vadd.f32 %v255, %v48
    %v348 = vadd.f32 %v255, %v49
    %v349 = vadd.f32 %v255, %v50
    %v350 = vadd.f32 %v255, %v51
    %v351 = vadd.f32 %v255, %v52
    %v352 = vadd.f32 %v255, %v53
    %v353 = vadd.f32 %v255, %v54
    %v354 = vadd.f32 %v255, %v55
    %v355 = vadd.f32 %v255, %v56
    %v356 = vadd.f32 %v259, %v41
    %v357 = vadd.f32 %v259, %v42
    %v358 = vadd.f32 %v259, %v43
    %v359 = vadd.f32 %v259, %v44
    %v360 = vadd.f32 %v259, %v45
    %v361 = vadd.f32 %v259, %v46
    %v362 = vadd.f32 %v259, %v47
    %v363 = vadd.f32 %v259, %v48
    %v364 = vadd.f32 %v259, %v49
    %v365 = vadd.f32 %v259, %v50
    %v366 = vadd.f32 %v259, %v51
    %v367 = vadd.f32 %v259, %v52
    %v368 = vadd.f32 %v259, %v53
    %v369 = vadd.f32 %v259, %v54
    %v370 = vadd.f32 %v259, %v55
    %v371 = vadd.f32 %v259, %v56
    %v372 = vadd.f32 %v263, %v41
    %v373 = vadd.f32 %v263, %v42
    %v374 = vadd.f32 %v263, %v43
    %v375 = vadd.f32 %v263, %v44
    %v376 = vadd.f32 %v263, %v45
    %v377 = vadd.f32 %v263, %v46
    %v378 = vadd.f32 %v263, %v47
    %v379 = vadd.f32 %v263, %v48
    %v380 = vadd.f32 %v263, %v49
    %v381 = vadd.f32 %v263, %v50
    %v382 = vadd.f32 %v263, %v51
    %v383 = vadd.f32 %v263, %v52
    %v384 = vadd.f32 %v263, %v53
    %v385 = vadd.f32 %v263, %v54
    %v386 = vadd.f32 %v263, %v55
    %v387 = vadd.f32 %v263, %v56
    %v388 = vadd.f32 %v267, %v41
    %v389 = vadd.f32 %v267, %v42
    %v390 = vadd.f32 %v267, %v43
    %v391 = vadd.f32 %v267, %v44
    %v392 = vadd.f32 %v267, %v45
    %v393 = vadd.f32 %v267, %v46
    %v394 = vadd.f32 %v267, %v47
    %v395 = vadd.f32 %v267, %v48
    %v396 = vadd.f32 %v267, %v49
    %v397 = vadd.f32 %v267, %v50
    %v398 = vadd.f32 %v267, %v51
    %v399 = vadd.f32 %v267, %v52
    %v400 = vadd.f32 %v267, %v53
    %v401 = vadd.f32 %v267, %v54
    %v402 = vadd.f32 %v267, %v55
    %v403 = vadd.f32 %v267, %v56
    %404 = vmin.xlane.f32.xlu0 %v276
    %v405 = vpop.xlane.xlu0 %404
    %406 = vmin.xlane.f32.xlu0 %v277
    %v407 = vpop.xlane.xlu0 %406
    %408 = vmin.xlane.f32.xlu0 %v278
    %v409 = vpop.xlane.xlu0 %408
    %410 = vmin.xlane.f32.xlu0 %v279
    %v411 = vpop.xlane.xlu0 %410
    %412 = vmin.xlane.f32.xlu0 %v280
    %v413 = vpop.xlane.xlu0 %412
    %414 = vmin.xlane.f32.xlu0 %v281
    %v415 = vpop.xlane.xlu0 %414
    %416 = vmin.xlane.f32.xlu0 %v282
    %v417 = vpop.xlane.xlu0 %416
    %418 = vmin.xlane.f32.xlu0 %v283
    %v419 = vpop.xlane.xlu0 %418
    %420 = vmin.xlane.f32.xlu0 %v284
    %v421 = vpop.xlane.xlu0 %420
    %422 = vmin.xlane.f32.xlu0 %v285
    %v423 = vpop.xlane.xlu0 %422
    %424 = vmin.xlane.f32.xlu0 %v286
    %v425 = vpop.xlane.xlu0 %424
    %426 = vmin.xlane.f32.xlu0 %v287
    %v427 = vpop.xlane.xlu0 %426
    %428 = vmin.xlane.f32.xlu0 %v288
    %v429 = vpop.xlane.xlu0 %428
    %430 = vmin.xlane.f32.xlu0 %v289
    %v431 = vpop.xlane.xlu0 %430
    %432 = vmin.xlane.f32.xlu0 %v290
    %v433 = vpop.xlane.xlu0 %432
    %434 = vmin.xlane.f32.xlu0 %v291
    %v435 = vpop.xlane.xlu0 %434
    %436 = vmin.xlane.f32.xlu0 %v292
    %v437 = vpop.xlane.xlu0 %436
    %438 = vmin.xlane.f32.xlu0 %v293
    %v439 = vpop.xlane.xlu0 %438
    %440 = vmin.xlane.f32.xlu0 %v294
    %v441 = vpop.xlane.xlu0 %440
    %442 = vmin.xlane.f32.xlu0 %v295
    %v443 = vpop.xlane.xlu0 %442
    %444 = vmin.xlane.f32.xlu0 %v296
    %v445 = vpop.xlane.xlu0 %444
    %446 = vmin.xlane.f32.xlu0 %v297
    %v447 = vpop.xlane.xlu0 %446
    %448 = vmin.xlane.f32.xlu0 %v298
    %v449 = vpop.xlane.xlu0 %448
    %450 = vmin.xlane.f32.xlu0 %v299
    %v451 = vpop.xlane.xlu0 %450
    %452 = vmin.xlane.f32.xlu0 %v300
    %v453 = vpop.xlane.xlu0 %452
    %454 = vmin.xlane.f32.xlu0 %v301
    %v455 = vpop.xlane.xlu0 %454
    %456 = vmin.xlane.f32.xlu0 %v302
    %v457 = vpop.xlane.xlu0 %456
    %458 = vmin.xlane.f32.xlu0 %v303
    %v459 = vpop.xlane.xlu0 %458
    %460 = vmin.xlane.f32.xlu0 %v304
    %v461 = vpop.xlane.xlu0 %460
    %462 = vmin.xlane.f32.xlu0 %v305
    %v463 = vpop.xlane.xlu0 %462
    %464 = vmin.xlane.f32.xlu0 %v306
    %v465 = vpop.xlane.xlu0 %464
    %466 = vmin.xlane.f32.xlu0 %v307
    %v467 = vpop.xlane.xlu0 %466
    %468 = vmin.xlane.f32.xlu0 %v308
    %v469 = vpop.xlane.xlu0 %468
    %470 = vmin.xlane.f32.xlu0 %v309
    %v471 = vpop.xlane.xlu0 %470
    %472 = vmin.xlane.f32.xlu0 %v310
    %v473 = vpop.xlane.xlu0 %472
    %474 = vmin.xlane.f32.xlu0 %v311
    %v475 = vpop.xlane.xlu0 %474
    %476 = vmin.xlane.f32.xlu0 %v312
    %v477 = vpop.xlane.xlu0 %476
    %478 = vmin.xlane.f32.xlu0 %v313
    %v479 = vpop.xlane.xlu0 %478
    %480 = vmin.xlane.f32.xlu0 %v314
    %v481 = vpop.xlane.xlu0 %480
    %482 = vmin.xlane.f32.xlu0 %v315
    %v483 = vpop.xlane.xlu0 %482
    %484 = vmin.xlane.f32.xlu0 %v316
    %v485 = vpop.xlane.xlu0 %484
    %486 = vmin.xlane.f32.xlu0 %v317
    %v487 = vpop.xlane.xlu0 %486
    %488 = vmin.xlane.f32.xlu0 %v318
    %v489 = vpop.xlane.xlu0 %488
    %490 = vmin.xlane.f32.xlu0 %v319
    %v491 = vpop.xlane.xlu0 %490
    %492 = vmin.xlane.f32.xlu0 %v320
    %v493 = vpop.xlane.xlu0 %492
    %494 = vmin.xlane.f32.xlu0 %v321
    %v495 = vpop.xlane.xlu0 %494
    %496 = vmin.xlane.f32.xlu0 %v322
    %v497 = vpop.xlane.xlu0 %496
    %498 = vmin.xlane.f32.xlu0 %v323
    %v499 = vpop.xlane.xlu0 %498
    %500 = vmin.xlane.f32.xlu0 %v324
    %v501 = vpop.xlane.xlu0 %500
    %502 = vmin.xlane.f32.xlu0 %v325
    %v503 = vpop.xlane.xlu0 %502
    %504 = vmin.xlane.f32.xlu0 %v326
    %v505 = vpop.xlane.xlu0 %504
    %506 = vmin.xlane.f32.xlu0 %v327
    %v507 = vpop.xlane.xlu0 %506
    %508 = vmin.xlane.f32.xlu0 %v328
    %v509 = vpop.xlane.xlu0 %508
    %510 = vmin.xlane.f32.xlu0 %v329
    %v511 = vpop.xlane.xlu0 %510
    %512 = vmin.xlane.f32.xlu0 %v330
    %v513 = vpop.xlane.xlu0 %512
    %514 = vmin.xlane.f32.xlu0 %v331
    %v515 = vpop.xlane.xlu0 %514
    %516 = vmin.xlane.f32.xlu0 %v332
    %v517 = vpop.xlane.xlu0 %516
    %518 = vmin.xlane.f32.xlu0 %v333
    %v519 = vpop.xlane.xlu0 %518
    %520 = vmin.xlane.f32.xlu0 %v334
    %v521 = vpop.xlane.xlu0 %520
    %522 = vmin.xlane.f32.xlu0 %v335
    %v523 = vpop.xlane.xlu0 %522
    %524 = vmin.xlane.f32.xlu0 %v336
    %v525 = vpop.xlane.xlu0 %524
    %526 = vmin.xlane.f32.xlu0 %v337
    %v527 = vpop.xlane.xlu0 %526
    %528 = vmin.xlane.f32.xlu0 %v338
    %v529 = vpop.xlane.xlu0 %528
    %530 = vmin.xlane.f32.xlu0 %v339
    %v531 = vpop.xlane.xlu0 %530
    %532 = vmin.xlane.f32.xlu0 %v340
    %v533 = vpop.xlane.xlu0 %532
    %534 = vmin.xlane.f32.xlu0 %v341
    %v535 = vpop.xlane.xlu0 %534
    %536 = vmin.xlane.f32.xlu0 %v342
    %v537 = vpop.xlane.xlu0 %536
    %538 = vmin.xlane.f32.xlu0 %v343
    %v539 = vpop.xlane.xlu0 %538
    %540 = vmin.xlane.f32.xlu0 %v344
    %v541 = vpop.xlane.xlu0 %540
    %542 = vmin.xlane.f32.xlu0 %v345
    %v543 = vpop.xlane.xlu0 %542
    %544 = vmin.xlane.f32.xlu0 %v346
    %v545 = vpop.xlane.xlu0 %544
    %546 = vmin.xlane.f32.xlu0 %v347
    %v547 = vpop.xlane.xlu0 %546
    %548 = vmin.xlane.f32.xlu0 %v348
    %v549 = vpop.xlane.xlu0 %548
    %550 = vmin.xlane.f32.xlu0 %v349
    %v551 = vpop.xlane.xlu0 %550
    %552 = vmin.xlane.f32.xlu0 %v350
    %v553 = vpop.xlane.xlu0 %552
    %554 = vmin.xlane.f32.xlu0 %v351
    %v555 = vpop.xlane.xlu0 %554
    %556 = vmin.xlane.f32.xlu0 %v352
    %v557 = vpop.xlane.xlu0 %556
    %558 = vmin.xlane.f32.xlu0 %v353
    %v559 = vpop.xlane.xlu0 %558
    %560 = vmin.xlane.f32.xlu0 %v354
    %v561 = vpop.xlane.xlu0 %560
    %562 = vmin.xlane.f32.xlu0 %v355
    %v563 = vpop.xlane.xlu0 %562
    %564 = vmin.xlane.f32.xlu0 %v356
    %v565 = vpop.xlane.xlu0 %564
    %566 = vmin.xlane.f32.xlu0 %v357
    %v567 = vpop.xlane.xlu0 %566
    %568 = vmin.xlane.f32.xlu0 %v358
    %v569 = vpop.xlane.xlu0 %568
    %570 = vmin.xlane.f32.xlu0 %v359
    %v571 = vpop.xlane.xlu0 %570
    %572 = vmin.xlane.f32.xlu0 %v360
    %v573 = vpop.xlane.xlu0 %572
    %574 = vmin.xlane.f32.xlu0 %v361
    %v575 = vpop.xlane.xlu0 %574
    %576 = vmin.xlane.f32.xlu0 %v362
    %v577 = vpop.xlane.xlu0 %576
    %578 = vmin.xlane.f32.xlu0 %v363
    %v579 = vpop.xlane.xlu0 %578
    %580 = vmin.xlane.f32.xlu0 %v364
    %v581 = vpop.xlane.xlu0 %580
    %582 = vmin.xlane.f32.xlu0 %v365
    %v583 = vpop.xlane.xlu0 %582
    %584 = vmin.xlane.f32.xlu0 %v366
    %v585 = vpop.xlane.xlu0 %584
    %586 = vmin.xlane.f32.xlu0 %v367
    %v587 = vpop.xlane.xlu0 %586
    %588 = vmin.xlane.f32.xlu0 %v368
    %v589 = vpop.xlane.xlu0 %588
    %590 = vmin.xlane.f32.xlu0 %v369
    %v591 = vpop.xlane.xlu0 %590
    %592 = vmin.xlane.f32.xlu0 %v370
    %v593 = vpop.xlane.xlu0 %592
    %594 = vmin.xlane.f32.xlu0 %v371
    %v595 = vpop.xlane.xlu0 %594
    %596 = vmin.xlane.f32.xlu0 %v372
    %v597 = vpop.xlane.xlu0 %596
    %598 = vmin.xlane.f32.xlu0 %v373
    %v599 = vpop.xlane.xlu0 %598
    %600 = vmin.xlane.f32.xlu0 %v374
    %v601 = vpop.xlane.xlu0 %600
    %602 = vmin.xlane.f32.xlu0 %v375
    %v603 = vpop.xlane.xlu0 %602
    %604 = vmin.xlane.f32.xlu0 %v376
    %v605 = vpop.xlane.xlu0 %604
    %606 = vmin.xlane.f32.xlu0 %v377
    %v607 = vpop.xlane.xlu0 %606
    %608 = vmin.xlane.f32.xlu0 %v378
    %v609 = vpop.xlane.xlu0 %608
    %610 = vmin.xlane.f32.xlu0 %v379
    %v611 = vpop.xlane.xlu0 %610
    %612 = vmin.xlane.f32.xlu0 %v380
    %v613 = vpop.xlane.xlu0 %612
    %614 = vmin.xlane.f32.xlu0 %v381
    %v615 = vpop.xlane.xlu0 %614
    %616 = vmin.xlane.f32.xlu0 %v382
    %v617 = vpop.xlane.xlu0 %616
    %618 = vmin.xlane.f32.xlu0 %v383
    %v619 = vpop.xlane.xlu0 %618
    %620 = vmin.xlane.f32.xlu0 %v384
    %v621 = vpop.xlane.xlu0 %620
    %622 = vmin.xlane.f32.xlu0 %v385
    %v623 = vpop.xlane.xlu0 %622
    %624 = vmin.xlane.f32.xlu0 %v386
    %v625 = vpop.xlane.xlu0 %624
    %626 = vmin.xlane.f32.xlu0 %v387
    %v627 = vpop.xlane.xlu0 %626
    %628 = vmin.xlane.f32.xlu0 %v388
    %v629 = vpop.xlane.xlu0 %628
    %630 = vmin.xlane.f32.xlu0 %v389
    %v631 = vpop.xlane.xlu0 %630
    %632 = vmin.xlane.f32.xlu0 %v390
    %v633 = vpop.xlane.xlu0 %632
    %634 = vmin.xlane.f32.xlu0 %v391
    %v635 = vpop.xlane.xlu0 %634
    %636 = vmin.xlane.f32.xlu0 %v392
    %v637 = vpop.xlane.xlu0 %636
    %638 = vmin.xlane.f32.xlu0 %v393
    %v639 = vpop.xlane.xlu0 %638
    %640 = vmin.xlane.f32.xlu0 %v394
    %v641 = vpop.xlane.xlu0 %640
    %642 = vmin.xlane.f32.xlu0 %v395
    %v643 = vpop.xlane.xlu0 %642
    %644 = vmin.xlane.f32.xlu0 %v396
    %v645 = vpop.xlane.xlu0 %644
    %646 = vmin.xlane.f32.xlu0 %v397
    %v647 = vpop.xlane.xlu0 %646
    %648 = vmin.xlane.f32.xlu0 %v398
    %v649 = vpop.xlane.xlu0 %648
    %650 = vmin.xlane.f32.xlu0 %v399
    %v651 = vpop.xlane.xlu0 %650
    %652 = vmin.xlane.f32.xlu0 %v400
    %v653 = vpop.xlane.xlu0 %652
    %654 = vmin.xlane.f32.xlu0 %v401
    %v655 = vpop.xlane.xlu0 %654
    %656 = vmin.xlane.f32.xlu0 %v402
    %v657 = vpop.xlane.xlu0 %656
    %658 = vmin.xlane.f32.xlu0 %v403
    %v659 = vpop.xlane.xlu0 %658
    %661 = vset.pattern.permute.xlu0 0
    %662 = vperm.xlu0 %661, %v24
    %v663 = vpop.permute.xlu0 %662
    %v664 = vlaneseq
    %v665 = vshrl.u32 %v664, 7
    %v666 = vsub.s32 0, %v665
    %v667 = vrot.slane %v663, %v666
    %v668 = vlaneseq
    %v669 = vshrl.u32 %v668, 7
    %v670 = vsub.s32 1, %v669
    %v671 = vrot.slane %v663, %v670
    %v672 = vlaneseq
    %v673 = vshrl.u32 %v672, 7
    %v674 = vsub.s32 2, %v673
    %v675 = vrot.slane %v663, %v674
    %v676 = vlaneseq
    %v677 = vshrl.u32 %v676, 7
    %v678 = vsub.s32 3, %v677
    %v679 = vrot.slane %v663, %v678
    %v680 = vlaneseq
    %v681 = vshrl.u32 %v680, 7
    %v682 = vsub.s32 4, %v681
    %v683 = vrot.slane %v663, %v682
    %v684 = vlaneseq
    %v685 = vshrl.u32 %v684, 7
    %v686 = vsub.s32 5, %v685
    %v687 = vrot.slane %v663, %v686
    %v688 = vlaneseq
    %v689 = vshrl.u32 %v688, 7
    %v690 = vsub.s32 6, %v689
    %v691 = vrot.slane %v663, %v690
    %v692 = vlaneseq
    %v693 = vshrl.u32 %v692, 7
    %v694 = vsub.s32 7, %v693
    %v695 = vrot.slane %v663, %v694
    %v704 = vmax.f32 %v405, %v667
    %v705 = vmax.f32 %v407, %v667
    %v706 = vmax.f32 %v409, %v667
    %v707 = vmax.f32 %v411, %v667
    %v708 = vmax.f32 %v413, %v667
    %v709 = vmax.f32 %v415, %v667
    %v710 = vmax.f32 %v417, %v667
    %v711 = vmax.f32 %v419, %v667
    %v712 = vmax.f32 %v421, %v667
    %v713 = vmax.f32 %v423, %v667
    %v714 = vmax.f32 %v425, %v667
    %v715 = vmax.f32 %v427, %v667
    %v716 = vmax.f32 %v429, %v667
    %v717 = vmax.f32 %v431, %v667
    %v718 = vmax.f32 %v433, %v667
    %v719 = vmax.f32 %v435, %v667
    %v720 = vmax.f32 %v437, %v671
    %v721 = vmax.f32 %v439, %v671
    %v722 = vmax.f32 %v441, %v671
    %v723 = vmax.f32 %v443, %v671
    %v724 = vmax.f32 %v445, %v671
    %v725 = vmax.f32 %v447, %v671
    %v726 = vmax.f32 %v449, %v671
    %v727 = vmax.f32 %v451, %v671
    %v728 = vmax.f32 %v453, %v671
    %v729 = vmax.f32 %v455, %v671
    %v730 = vmax.f32 %v457, %v671
    %v731 = vmax.f32 %v459, %v671
    %v732 = vmax.f32 %v461, %v671
    %v733 = vmax.f32 %v463, %v671
    %v734 = vmax.f32 %v465, %v671
    %v735 = vmax.f32 %v467, %v671
    %v736 = vmax.f32 %v469, %v675
    %v737 = vmax.f32 %v471, %v675
    %v738 = vmax.f32 %v473, %v675
    %v739 = vmax.f32 %v475, %v675
    %v740 = vmax.f32 %v477, %v675
    %v741 = vmax.f32 %v479, %v675
    %v742 = vmax.f32 %v481, %v675
    %v743 = vmax.f32 %v483, %v675
    %v744 = vmax.f32 %v485, %v675
    %v745 = vmax.f32 %v487, %v675
    %v746 = vmax.f32 %v489, %v675
    %v747 = vmax.f32 %v491, %v675
    %v748 = vmax.f32 %v493, %v675
    %v749 = vmax.f32 %v495, %v675
    %v750 = vmax.f32 %v497, %v675
    %v751 = vmax.f32 %v499, %v675
    %v752 = vmax.f32 %v501, %v679
    %v753 = vmax.f32 %v503, %v679
    %v754 = vmax.f32 %v505, %v679
    %v755 = vmax.f32 %v507, %v679
    %v756 = vmax.f32 %v509, %v679
    %v757 = vmax.f32 %v511, %v679
    %v758 = vmax.f32 %v513, %v679
    %v759 = vmax.f32 %v515, %v679
    %v760 = vmax.f32 %v517, %v679
    %v761 = vmax.f32 %v519, %v679
    %v762 = vmax.f32 %v521, %v679
    %v763 = vmax.f32 %v523, %v679
    %v764 = vmax.f32 %v525, %v679
    %v765 = vmax.f32 %v527, %v679
    %v766 = vmax.f32 %v529, %v679
    %v767 = vmax.f32 %v531, %v679
    %v768 = vmax.f32 %v533, %v683
    %v769 = vmax.f32 %v535, %v683
    %v770 = vmax.f32 %v537, %v683
    %v771 = vmax.f32 %v539, %v683
    %v772 = vmax.f32 %v541, %v683
    %v773 = vmax.f32 %v543, %v683
    %v774 = vmax.f32 %v545, %v683
    %v775 = vmax.f32 %v547, %v683
    %v776 = vmax.f32 %v549, %v683
    %v777 = vmax.f32 %v551, %v683
    %v778 = vmax.f32 %v553, %v683
    %v779 = vmax.f32 %v555, %v683
    %v780 = vmax.f32 %v557, %v683
    %v781 = vmax.f32 %v559, %v683
    %v782 = vmax.f32 %v561, %v683
    %v783 = vmax.f32 %v563, %v683
    %v784 = vmax.f32 %v565, %v687
    %v785 = vmax.f32 %v567, %v687
    %v786 = vmax.f32 %v569, %v687
    %v787 = vmax.f32 %v571, %v687
    %v788 = vmax.f32 %v573, %v687
    %v789 = vmax.f32 %v575, %v687
    %v790 = vmax.f32 %v577, %v687
    %v791 = vmax.f32 %v579, %v687
    %v792 = vmax.f32 %v581, %v687
    %v793 = vmax.f32 %v583, %v687
    %v794 = vmax.f32 %v585, %v687
    %v795 = vmax.f32 %v587, %v687
    %v796 = vmax.f32 %v589, %v687
    %v797 = vmax.f32 %v591, %v687
    %v798 = vmax.f32 %v593, %v687
    %v799 = vmax.f32 %v595, %v687
    %v800 = vmax.f32 %v597, %v691
    %v801 = vmax.f32 %v599, %v691
    %v802 = vmax.f32 %v601, %v691
    %v803 = vmax.f32 %v603, %v691
    %v804 = vmax.f32 %v605, %v691
    %v805 = vmax.f32 %v607, %v691
    %v806 = vmax.f32 %v609, %v691
    %v807 = vmax.f32 %v611, %v691
    %v808 = vmax.f32 %v613, %v691
    %v809 = vmax.f32 %v615, %v691
    %v810 = vmax.f32 %v617, %v691
    %v811 = vmax.f32 %v619, %v691
    %v812 = vmax.f32 %v621, %v691
    %v813 = vmax.f32 %v623, %v691
    %v814 = vmax.f32 %v625, %v691
    %v815 = vmax.f32 %v627, %v691
    %v816 = vmax.f32 %v629, %v695
    %v817 = vmax.f32 %v631, %v695
    %v818 = vmax.f32 %v633, %v695
    %v819 = vmax.f32 %v635, %v695
    %v820 = vmax.f32 %v637, %v695
    %v821 = vmax.f32 %v639, %v695
    %v822 = vmax.f32 %v641, %v695
    %v823 = vmax.f32 %v643, %v695
    %v824 = vmax.f32 %v645, %v695
    %v825 = vmax.f32 %v647, %v695
    %v826 = vmax.f32 %v649, %v695
    %v827 = vmax.f32 %v651, %v695
    %v828 = vmax.f32 %v653, %v695
    %v829 = vmax.f32 %v655, %v695
    %v830 = vmax.f32 %v657, %v695
    %v831 = vmax.f32 %v659, %v695
    %960 = vset.pattern.permute.xlu0 0
    %961 = vperm.xlu0 %960, %v704
    %v962 = vpop.permute.xlu0 %961
    %963 = vset.pattern.permute.xlu0 0
    %964 = vperm.xlu0 %963, %v705
    %v965 = vpop.permute.xlu0 %964
    %966 = vset.pattern.permute.xlu0 0
    %967 = vperm.xlu0 %966, %v706
    %v968 = vpop.permute.xlu0 %967
    %969 = vset.pattern.permute.xlu0 0
    %970 = vperm.xlu0 %969, %v707
    %v971 = vpop.permute.xlu0 %970
    %972 = vset.pattern.permute.xlu0 0
    %973 = vperm.xlu0 %972, %v708
    %v974 = vpop.permute.xlu0 %973
    %975 = vset.pattern.permute.xlu0 0
    %976 = vperm.xlu0 %975, %v709
    %v977 = vpop.permute.xlu0 %976
    %978 = vset.pattern.permute.xlu0 0
    %979 = vperm.xlu0 %978, %v710
    %v980 = vpop.permute.xlu0 %979
    %981 = vset.pattern.permute.xlu0 0
    %982 = vperm.xlu0 %981, %v711
    %v983 = vpop.permute.xlu0 %982
    %984 = vset.pattern.permute.xlu0 0
    %985 = vperm.xlu0 %984, %v712
    %v986 = vpop.permute.xlu0 %985
    %987 = vset.pattern.permute.xlu0 0
    %988 = vperm.xlu0 %987, %v713
    %v989 = vpop.permute.xlu0 %988
    %990 = vset.pattern.permute.xlu0 0
    %991 = vperm.xlu0 %990, %v714
    %v992 = vpop.permute.xlu0 %991
    %993 = vset.pattern.permute.xlu0 0
    %994 = vperm.xlu0 %993, %v715
    %v995 = vpop.permute.xlu0 %994
    %996 = vset.pattern.permute.xlu0 0
    %997 = vperm.xlu0 %996, %v716
    %v998 = vpop.permute.xlu0 %997
    %999 = vset.pattern.permute.xlu0 0
    %1000 = vperm.xlu0 %999, %v717
    %v1001 = vpop.permute.xlu0 %1000
    %1002 = vset.pattern.permute.xlu0 0
    %1003 = vperm.xlu0 %1002, %v718
    %v1004 = vpop.permute.xlu0 %1003
    %1005 = vset.pattern.permute.xlu0 0
    %1006 = vperm.xlu0 %1005, %v719
    %v1007 = vpop.permute.xlu0 %1006
    %1008 = vset.pattern.permute.xlu0 0
    %1009 = vperm.xlu0 %1008, %v720
    %v1010 = vpop.permute.xlu0 %1009
    %1011 = vset.pattern.permute.xlu0 0
    %1012 = vperm.xlu0 %1011, %v721
    %v1013 = vpop.permute.xlu0 %1012
    %1014 = vset.pattern.permute.xlu0 0
    %1015 = vperm.xlu0 %1014, %v722
    %v1016 = vpop.permute.xlu0 %1015
    %1017 = vset.pattern.permute.xlu0 0
    %1018 = vperm.xlu0 %1017, %v723
    %v1019 = vpop.permute.xlu0 %1018
    %1020 = vset.pattern.permute.xlu0 0
    %1021 = vperm.xlu0 %1020, %v724
    %v1022 = vpop.permute.xlu0 %1021
    %1023 = vset.pattern.permute.xlu0 0
    %1024 = vperm.xlu0 %1023, %v725
    %v1025 = vpop.permute.xlu0 %1024
    %1026 = vset.pattern.permute.xlu0 0
    %1027 = vperm.xlu0 %1026, %v726
    %v1028 = vpop.permute.xlu0 %1027
    %1029 = vset.pattern.permute.xlu0 0
    %1030 = vperm.xlu0 %1029, %v727
    %v1031 = vpop.permute.xlu0 %1030
    %1032 = vset.pattern.permute.xlu0 0
    %1033 = vperm.xlu0 %1032, %v728
    %v1034 = vpop.permute.xlu0 %1033
    %1035 = vset.pattern.permute.xlu0 0
    %1036 = vperm.xlu0 %1035, %v729
    %v1037 = vpop.permute.xlu0 %1036
    %1038 = vset.pattern.permute.xlu0 0
    %1039 = vperm.xlu0 %1038, %v730
    %v1040 = vpop.permute.xlu0 %1039
    %1041 = vset.pattern.permute.xlu0 0
    %1042 = vperm.xlu0 %1041, %v731
    %v1043 = vpop.permute.xlu0 %1042
    %1044 = vset.pattern.permute.xlu0 0
    %1045 = vperm.xlu0 %1044, %v732
    %v1046 = vpop.permute.xlu0 %1045
    %1047 = vset.pattern.permute.xlu0 0
    %1048 = vperm.xlu0 %1047, %v733
    %v1049 = vpop.permute.xlu0 %1048
    %1050 = vset.pattern.permute.xlu0 0
    %1051 = vperm.xlu0 %1050, %v734
    %v1052 = vpop.permute.xlu0 %1051
    %1053 = vset.pattern.permute.xlu0 0
    %1054 = vperm.xlu0 %1053, %v735
    %v1055 = vpop.permute.xlu0 %1054
    %1056 = vset.pattern.permute.xlu0 0
    %1057 = vperm.xlu0 %1056, %v736
    %v1058 = vpop.permute.xlu0 %1057
    %1059 = vset.pattern.permute.xlu0 0
    %1060 = vperm.xlu0 %1059, %v737
    %v1061 = vpop.permute.xlu0 %1060
    %1062 = vset.pattern.permute.xlu0 0
    %1063 = vperm.xlu0 %1062, %v738
    %v1064 = vpop.permute.xlu0 %1063
    %1065 = vset.pattern.permute.xlu0 0
    %1066 = vperm.xlu0 %1065, %v739
    %v1067 = vpop.permute.xlu0 %1066
    %1068 = vset.pattern.permute.xlu0 0
    %1069 = vperm.xlu0 %1068, %v740
    %v1070 = vpop.permute.xlu0 %1069
    %1071 = vset.pattern.permute.xlu0 0
    %1072 = vperm.xlu0 %1071, %v741
    %v1073 = vpop.permute.xlu0 %1072
    %1074 = vset.pattern.permute.xlu0 0
    %1075 = vperm.xlu0 %1074, %v742
    %v1076 = vpop.permute.xlu0 %1075
    %1077 = vset.pattern.permute.xlu0 0
    %1078 = vperm.xlu0 %1077, %v743
    %v1079 = vpop.permute.xlu0 %1078
    %1080 = vset.pattern.permute.xlu0 0
    %1081 = vperm.xlu0 %1080, %v744
    %v1082 = vpop.permute.xlu0 %1081
    %1083 = vset.pattern.permute.xlu0 0
    %1084 = vperm.xlu0 %1083, %v745
    %v1085 = vpop.permute.xlu0 %1084
    %1086 = vset.pattern.permute.xlu0 0
    %1087 = vperm.xlu0 %1086, %v746
    %v1088 = vpop.permute.xlu0 %1087
    %1089 = vset.pattern.permute.xlu0 0
    %1090 = vperm.xlu0 %1089, %v747
    %v1091 = vpop.permute.xlu0 %1090
    %1092 = vset.pattern.permute.xlu0 0
    %1093 = vperm.xlu0 %1092, %v748
    %v1094 = vpop.permute.xlu0 %1093
    %1095 = vset.pattern.permute.xlu0 0
    %1096 = vperm.xlu0 %1095, %v749
    %v1097 = vpop.permute.xlu0 %1096
    %1098 = vset.pattern.permute.xlu0 0
    %1099 = vperm.xlu0 %1098, %v750
    %v1100 = vpop.permute.xlu0 %1099
    %1101 = vset.pattern.permute.xlu0 0
    %1102 = vperm.xlu0 %1101, %v751
    %v1103 = vpop.permute.xlu0 %1102
    %1104 = vset.pattern.permute.xlu0 0
    %1105 = vperm.xlu0 %1104, %v752
    %v1106 = vpop.permute.xlu0 %1105
    %1107 = vset.pattern.permute.xlu0 0
    %1108 = vperm.xlu0 %1107, %v753
    %v1109 = vpop.permute.xlu0 %1108
    %1110 = vset.pattern.permute.xlu0 0
    %1111 = vperm.xlu0 %1110, %v754
    %v1112 = vpop.permute.xlu0 %1111
    %1113 = vset.pattern.permute.xlu0 0
    %1114 = vperm.xlu0 %1113, %v755
    %v1115 = vpop.permute.xlu0 %1114
    %1116 = vset.pattern.permute.xlu0 0
    %1117 = vperm.xlu0 %1116, %v756
    %v1118 = vpop.permute.xlu0 %1117
    %1119 = vset.pattern.permute.xlu0 0
    %1120 = vperm.xlu0 %1119, %v757
    %v1121 = vpop.permute.xlu0 %1120
    %1122 = vset.pattern.permute.xlu0 0
    %1123 = vperm.xlu0 %1122, %v758
    %v1124 = vpop.permute.xlu0 %1123
    %1125 = vset.pattern.permute.xlu0 0
    %1126 = vperm.xlu0 %1125, %v759
    %v1127 = vpop.permute.xlu0 %1126
    %1128 = vset.pattern.permute.xlu0 0
    %1129 = vperm.xlu0 %1128, %v760
    %v1130 = vpop.permute.xlu0 %1129
    %1131 = vset.pattern.permute.xlu0 0
    %1132 = vperm.xlu0 %1131, %v761
    %v1133 = vpop.permute.xlu0 %1132
    %1134 = vset.pattern.permute.xlu0 0
    %1135 = vperm.xlu0 %1134, %v762
    %v1136 = vpop.permute.xlu0 %1135
    %1137 = vset.pattern.permute.xlu0 0
    %1138 = vperm.xlu0 %1137, %v763
    %v1139 = vpop.permute.xlu0 %1138
    %1140 = vset.pattern.permute.xlu0 0
    %1141 = vperm.xlu0 %1140, %v764
    %v1142 = vpop.permute.xlu0 %1141
    %1143 = vset.pattern.permute.xlu0 0
    %1144 = vperm.xlu0 %1143, %v765
    %v1145 = vpop.permute.xlu0 %1144
    %1146 = vset.pattern.permute.xlu0 0
    %1147 = vperm.xlu0 %1146, %v766
    %v1148 = vpop.permute.xlu0 %1147
    %1149 = vset.pattern.permute.xlu0 0
    %1150 = vperm.xlu0 %1149, %v767
    %v1151 = vpop.permute.xlu0 %1150
    %1152 = vset.pattern.permute.xlu0 0
    %1153 = vperm.xlu0 %1152, %v768
    %v1154 = vpop.permute.xlu0 %1153
    %1155 = vset.pattern.permute.xlu0 0
    %1156 = vperm.xlu0 %1155, %v769
    %v1157 = vpop.permute.xlu0 %1156
    %1158 = vset.pattern.permute.xlu0 0
    %1159 = vperm.xlu0 %1158, %v770
    %v1160 = vpop.permute.xlu0 %1159
    %1161 = vset.pattern.permute.xlu0 0
    %1162 = vperm.xlu0 %1161, %v771
    %v1163 = vpop.permute.xlu0 %1162
    %1164 = vset.pattern.permute.xlu0 0
    %1165 = vperm.xlu0 %1164, %v772
    %v1166 = vpop.permute.xlu0 %1165
    %1167 = vset.pattern.permute.xlu0 0
    %1168 = vperm.xlu0 %1167, %v773
    %v1169 = vpop.permute.xlu0 %1168
    %1170 = vset.pattern.permute.xlu0 0
    %1171 = vperm.xlu0 %1170, %v774
    %v1172 = vpop.permute.xlu0 %1171
    %1173 = vset.pattern.permute.xlu0 0
    %1174 = vperm.xlu0 %1173, %v775
    %v1175 = vpop.permute.xlu0 %1174
    %1176 = vset.pattern.permute.xlu0 0
    %1177 = vperm.xlu0 %1176, %v776
    %v1178 = vpop.permute.xlu0 %1177
    %1179 = vset.pattern.permute.xlu0 0
    %1180 = vperm.xlu0 %1179, %v777
    %v1181 = vpop.permute.xlu0 %1180
    %1182 = vset.pattern.permute.xlu0 0
    %1183 = vperm.xlu0 %1182, %v778
    %v1184 = vpop.permute.xlu0 %1183
    %1185 = vset.pattern.permute.xlu0 0
    %1186 = vperm.xlu0 %1185, %v779
    %v1187 = vpop.permute.xlu0 %1186
    %1188 = vset.pattern.permute.xlu0 0
    %1189 = vperm.xlu0 %1188, %v780
    %v1190 = vpop.permute.xlu0 %1189
    %1191 = vset.pattern.permute.xlu0 0
    %1192 = vperm.xlu0 %1191, %v781
    %v1193 = vpop.permute.xlu0 %1192
    %1194 = vset.pattern.permute.xlu0 0
    %1195 = vperm.xlu0 %1194, %v782
    %v1196 = vpop.permute.xlu0 %1195
    %1197 = vset.pattern.permute.xlu0 0
    %1198 = vperm.xlu0 %1197, %v783
    %v1199 = vpop.permute.xlu0 %1198
    %1200 = vset.pattern.permute.xlu0 0
    %1201 = vperm.xlu0 %1200, %v784
    %v1202 = vpop.permute.xlu0 %1201
    %1203 = vset.pattern.permute.xlu0 0
    %1204 = vperm.xlu0 %1203, %v785
    %v1205 = vpop.permute.xlu0 %1204
    %1206 = vset.pattern.permute.xlu0 0
    %1207 = vperm.xlu0 %1206, %v786
    %v1208 = vpop.permute.xlu0 %1207
    %1209 = vset.pattern.permute.xlu0 0
    %1210 = vperm.xlu0 %1209, %v787
    %v1211 = vpop.permute.xlu0 %1210
    %1212 = vset.pattern.permute.xlu0 0
    %1213 = vperm.xlu0 %1212, %v788
    %v1214 = vpop.permute.xlu0 %1213
    %1215 = vset.pattern.permute.xlu0 0
    %1216 = vperm.xlu0 %1215, %v789
    %v1217 = vpop.permute.xlu0 %1216
    %1218 = vset.pattern.permute.xlu0 0
    %1219 = vperm.xlu0 %1218, %v790
    %v1220 = vpop.permute.xlu0 %1219
    %1221 = vset.pattern.permute.xlu0 0
    %1222 = vperm.xlu0 %1221, %v791
    %v1223 = vpop.permute.xlu0 %1222
    %1224 = vset.pattern.permute.xlu0 0
    %1225 = vperm.xlu0 %1224, %v792
    %v1226 = vpop.permute.xlu0 %1225
    %1227 = vset.pattern.permute.xlu0 0
    %1228 = vperm.xlu0 %1227, %v793
    %v1229 = vpop.permute.xlu0 %1228
    %1230 = vset.pattern.permute.xlu0 0
    %1231 = vperm.xlu0 %1230, %v794
    %v1232 = vpop.permute.xlu0 %1231
    %1233 = vset.pattern.permute.xlu0 0
    %1234 = vperm.xlu0 %1233, %v795
    %v1235 = vpop.permute.xlu0 %1234
    %1236 = vset.pattern.permute.xlu0 0
    %1237 = vperm.xlu0 %1236, %v796
    %v1238 = vpop.permute.xlu0 %1237
    %1239 = vset.pattern.permute.xlu0 0
    %1240 = vperm.xlu0 %1239, %v797
    %v1241 = vpop.permute.xlu0 %1240
    %1242 = vset.pattern.permute.xlu0 0
    %1243 = vperm.xlu0 %1242, %v798
    %v1244 = vpop.permute.xlu0 %1243
    %1245 = vset.pattern.permute.xlu0 0
    %1246 = vperm.xlu0 %1245, %v799
    %v1247 = vpop.permute.xlu0 %1246
    %1248 = vset.pattern.permute.xlu0 0
    %1249 = vperm.xlu0 %1248, %v800
    %v1250 = vpop.permute.xlu0 %1249
    %1251 = vset.pattern.permute.xlu0 0
    %1252 = vperm.xlu0 %1251, %v801
    %v1253 = vpop.permute.xlu0 %1252
    %1254 = vset.pattern.permute.xlu0 0
    %1255 = vperm.xlu0 %1254, %v802
    %v1256 = vpop.permute.xlu0 %1255
    %1257 = vset.pattern.permute.xlu0 0
    %1258 = vperm.xlu0 %1257, %v803
    %v1259 = vpop.permute.xlu0 %1258
    %1260 = vset.pattern.permute.xlu0 0
    %1261 = vperm.xlu0 %1260, %v804
    %v1262 = vpop.permute.xlu0 %1261
    %1263 = vset.pattern.permute.xlu0 0
    %1264 = vperm.xlu0 %1263, %v805
    %v1265 = vpop.permute.xlu0 %1264
    %1266 = vset.pattern.permute.xlu0 0
    %1267 = vperm.xlu0 %1266, %v806
    %v1268 = vpop.permute.xlu0 %1267
    %1269 = vset.pattern.permute.xlu0 0
    %1270 = vperm.xlu0 %1269, %v807
    %v1271 = vpop.permute.xlu0 %1270
    %1272 = vset.pattern.permute.xlu0 0
    %1273 = vperm.xlu0 %1272, %v808
    %v1274 = vpop.permute.xlu0 %1273
    %1275 = vset.pattern.permute.xlu0 0
    %1276 = vperm.xlu0 %1275, %v809
    %v1277 = vpop.permute.xlu0 %1276
    %1278 = vset.pattern.permute.xlu0 0
    %1279 = vperm.xlu0 %1278, %v810
    %v1280 = vpop.permute.xlu0 %1279
    %1281 = vset.pattern.permute.xlu0 0
    %1282 = vperm.xlu0 %1281, %v811
    %v1283 = vpop.permute.xlu0 %1282
    %1284 = vset.pattern.permute.xlu0 0
    %1285 = vperm.xlu0 %1284, %v812
    %v1286 = vpop.permute.xlu0 %1285
    %1287 = vset.pattern.permute.xlu0 0
    %1288 = vperm.xlu0 %1287, %v813
    %v1289 = vpop.permute.xlu0 %1288
    %1290 = vset.pattern.permute.xlu0 0
    %1291 = vperm.xlu0 %1290, %v814
    %v1292 = vpop.permute.xlu0 %1291
    %1293 = vset.pattern.permute.xlu0 0
    %1294 = vperm.xlu0 %1293, %v815
    %v1295 = vpop.permute.xlu0 %1294
    %1296 = vset.pattern.permute.xlu0 0
    %1297 = vperm.xlu0 %1296, %v816
    %v1298 = vpop.permute.xlu0 %1297
    %1299 = vset.pattern.permute.xlu0 0
    %1300 = vperm.xlu0 %1299, %v817
    %v1301 = vpop.permute.xlu0 %1300
    %1302 = vset.pattern.permute.xlu0 0
    %1303 = vperm.xlu0 %1302, %v818
    %v1304 = vpop.permute.xlu0 %1303
    %1305 = vset.pattern.permute.xlu0 0
    %1306 = vperm.xlu0 %1305, %v819
    %v1307 = vpop.permute.xlu0 %1306
    %1308 = vset.pattern.permute.xlu0 0
    %1309 = vperm.xlu0 %1308, %v820
    %v1310 = vpop.permute.xlu0 %1309
    %1311 = vset.pattern.permute.xlu0 0
    %1312 = vperm.xlu0 %1311, %v821
    %v1313 = vpop.permute.xlu0 %1312
    %1314 = vset.pattern.permute.xlu0 0
    %1315 = vperm.xlu0 %1314, %v822
    %v1316 = vpop.permute.xlu0 %1315
    %1317 = vset.pattern.permute.xlu0 0
    %1318 = vperm.xlu0 %1317, %v823
    %v1319 = vpop.permute.xlu0 %1318
    %1320 = vset.pattern.permute.xlu0 0
    %1321 = vperm.xlu0 %1320, %v824
    %v1322 = vpop.permute.xlu0 %1321
    %1323 = vset.pattern.permute.xlu0 0
    %1324 = vperm.xlu0 %1323, %v825
    %v1325 = vpop.permute.xlu0 %1324
    %1326 = vset.pattern.permute.xlu0 0
    %1327 = vperm.xlu0 %1326, %v826
    %v1328 = vpop.permute.xlu0 %1327
    %1329 = vset.pattern.permute.xlu0 0
    %1330 = vperm.xlu0 %1329, %v827
    %v1331 = vpop.permute.xlu0 %1330
    %1332 = vset.pattern.permute.xlu0 0
    %1333 = vperm.xlu0 %1332, %v828
    %v1334 = vpop.permute.xlu0 %1333
    %1335 = vset.pattern.permute.xlu0 0
    %1336 = vperm.xlu0 %1335, %v829
    %v1337 = vpop.permute.xlu0 %1336
    %1338 = vset.pattern.permute.xlu0 0
    %1339 = vperm.xlu0 %1338, %v830
    %v1340 = vpop.permute.xlu0 %1339
    %1341 = vset.pattern.permute.xlu0 0
    %1342 = vperm.xlu0 %1341, %v831
    %v1343 = vpop.permute.xlu0 %1342
    %v1344 = vlaneseq
    %v1345 = vand.u32 %v1344, 127
    %v1346 = vlaneseq
    %v1347 = vshrl.u32 %v1346, 7
    %v1348 = vsub.s32 %v1345, %v1347
    %v1349 = vrot.slane %v962, %v1348
    %v1350 = vadd.s32 %v1345, 4294967288
    %v1351 = vlaneseq
    %v1352 = vshrl.u32 %v1351, 7
    %v1353 = vsub.s32 %v1350, %v1352
    %v1354 = vrot.slane %v965, %v1353
    %vm1355 = vcmask 130112
    %v1356 = vsel %vm1355, %v1354, %v1349
    %v1357 = vadd.s32 %v1345, 4294967280
    %v1358 = vlaneseq
    %v1359 = vshrl.u32 %v1358, 7
    %v1360 = vsub.s32 %v1357, %v1359
    %v1361 = vrot.slane %v968, %v1360
    %vm1362 = vcmask 195712
    %v1363 = vsel %vm1362, %v1361, %v1356
    %v1364 = vadd.s32 %v1345, 4294967272
    %v1365 = vlaneseq
    %v1366 = vshrl.u32 %v1365, 7
    %v1367 = vsub.s32 %v1364, %v1366
    %v1368 = vrot.slane %v971, %v1367
    %vm1369 = vcmask 261312
    %v1370 = vsel %vm1369, %v1368, %v1363
    %v1371 = vadd.s32 %v1345, 4294967264
    %v1372 = vlaneseq
    %v1373 = vshrl.u32 %v1372, 7
    %v1374 = vsub.s32 %v1371, %v1373
    %v1375 = vrot.slane %v974, %v1374
    %vm1376 = vcmask 326912
    %v1377 = vsel %vm1376, %v1375, %v1370
    %v1378 = vadd.s32 %v1345, 4294967256
    %v1379 = vlaneseq
    %v1380 = vshrl.u32 %v1379, 7
    %v1381 = vsub.s32 %v1378, %v1380
    %v1382 = vrot.slane %v977, %v1381
    %vm1383 = vcmask 392512
    %v1384 = vsel %vm1383, %v1382, %v1377
    %v1385 = vadd.s32 %v1345, 4294967248
    %v1386 = vlaneseq
    %v1387 = vshrl.u32 %v1386, 7
    %v1388 = vsub.s32 %v1385, %v1387
    %v1389 = vrot.slane %v980, %v1388
    %vm1390 = vcmask 458112
    %v1391 = vsel %vm1390, %v1389, %v1384
    %v1392 = vadd.s32 %v1345, 4294967240
    %v1393 = vlaneseq
    %v1394 = vshrl.u32 %v1393, 7
    %v1395 = vsub.s32 %v1392, %v1394
    %v1396 = vrot.slane %v983, %v1395
    %vm1397 = vcmask 523712
    %v1398 = vsel %vm1397, %v1396, %v1391
    %v1399 = vadd.s32 %v1345, 4294967232
    %v1400 = vlaneseq
    %v1401 = vshrl.u32 %v1400, 7
    %v1402 = vsub.s32 %v1399, %v1401
    %v1403 = vrot.slane %v986, %v1402
    %vm1404 = vcmask 589312
    %v1405 = vsel %vm1404, %v1403, %v1398
    %v1406 = vadd.s32 %v1345, 4294967224
    %v1407 = vlaneseq
    %v1408 = vshrl.u32 %v1407, 7
    %v1409 = vsub.s32 %v1406, %v1408
    %v1410 = vrot.slane %v989, %v1409
    %vm1411 = vcmask 654912
    %v1412 = vsel %vm1411, %v1410, %v1405
    %v1413 = vadd.s32 %v1345, 4294967216
    %v1414 = vlaneseq
    %v1415 = vshrl.u32 %v1414, 7
    %v1416 = vsub.s32 %v1413, %v1415
    %v1417 = vrot.slane %v992, %v1416
    %vm1418 = vcmask 720512
    %v1419 = vsel %vm1418, %v1417, %v1412
    %v1420 = vadd.s32 %v1345, 4294967208
    %v1421 = vlaneseq
    %v1422 = vshrl.u32 %v1421, 7
    %v1423 = vsub.s32 %v1420, %v1422
    %v1424 = vrot.slane %v995, %v1423
    %vm1425 = vcmask 786112
    %v1426 = vsel %vm1425, %v1424, %v1419
    %v1427 = vadd.s32 %v1345, 4294967200
    %v1428 = vlaneseq
    %v1429 = vshrl.u32 %v1428, 7
    %v1430 = vsub.s32 %v1427, %v1429
    %v1431 = vrot.slane %v998, %v1430
    %vm1432 = vcmask 851712
    %v1433 = vsel %vm1432, %v1431, %v1426
    %v1434 = vadd.s32 %v1345, 4294967192
    %v1435 = vlaneseq
    %v1436 = vshrl.u32 %v1435, 7
    %v1437 = vsub.s32 %v1434, %v1436
    %v1438 = vrot.slane %v1001, %v1437
    %vm1439 = vcmask 917312
    %v1440 = vsel %vm1439, %v1438, %v1433
    %v1441 = vadd.s32 %v1345, 4294967184
    %v1442 = vlaneseq
    %v1443 = vshrl.u32 %v1442, 7
    %v1444 = vsub.s32 %v1441, %v1443
    %v1445 = vrot.slane %v1004, %v1444
    %vm1446 = vcmask 982912
    %v1447 = vsel %vm1446, %v1445, %v1440
    %v1448 = vadd.s32 %v1345, 4294967176
    %v1449 = vlaneseq
    %v1450 = vshrl.u32 %v1449, 7
    %v1451 = vsub.s32 %v1448, %v1450
    %v1452 = vrot.slane %v1007, %v1451
    %vm1453 = vcmask 1048512
    %v1454 = vsel %vm1453, %v1452, %v1447
    %v1455 = vlaneseq
    %v1456 = vshrl.u32 %v1455, 7
    %v1457 = vsub.s32 %v1345, %v1456
    %v1458 = vrot.slane %v1010, %v1457
    %v1459 = vlaneseq
    %v1460 = vshrl.u32 %v1459, 7
    %v1461 = vsub.s32 %v1350, %v1460
    %v1462 = vrot.slane %v1013, %v1461
    %v1463 = vsel %vm1355, %v1462, %v1458
    %v1464 = vlaneseq
    %v1465 = vshrl.u32 %v1464, 7
    %v1466 = vsub.s32 %v1357, %v1465
    %v1467 = vrot.slane %v1016, %v1466
    %v1468 = vsel %vm1362, %v1467, %v1463
    %v1469 = vlaneseq
    %v1470 = vshrl.u32 %v1469, 7
    %v1471 = vsub.s32 %v1364, %v1470
    %v1472 = vrot.slane %v1019, %v1471
    %v1473 = vsel %vm1369, %v1472, %v1468
    %v1474 = vlaneseq
    %v1475 = vshrl.u32 %v1474, 7
    %v1476 = vsub.s32 %v1371, %v1475
    %v1477 = vrot.slane %v1022, %v1476
    %v1478 = vsel %vm1376, %v1477, %v1473
    %v1479 = vlaneseq
    %v1480 = vshrl.u32 %v1479, 7
    %v1481 = vsub.s32 %v1378, %v1480
    %v1482 = vrot.slane %v1025, %v1481
    %v1483 = vsel %vm1383, %v1482, %v1478
    %v1484 = vlaneseq
    %v1485 = vshrl.u32 %v1484, 7
    %v1486 = vsub.s32 %v1385, %v1485
    %v1487 = vrot.slane %v1028, %v1486
    %v1488 = vsel %vm1390, %v1487, %v1483
    %v1489 = vlaneseq
    %v1490 = vshrl.u32 %v1489, 7
    %v1491 = vsub.s32 %v1392, %v1490
    %v1492 = vrot.slane %v1031, %v1491
    %v1493 = vsel %vm1397, %v1492, %v1488
    %v1494 = vlaneseq
    %v1495 = vshrl.u32 %v1494, 7
    %v1496 = vsub.s32 %v1399, %v1495
    %v1497 = vrot.slane %v1034, %v1496
    %v1498 = vsel %vm1404, %v1497, %v1493
    %v1499 = vlaneseq
    %v1500 = vshrl.u32 %v1499, 7
    %v1501 = vsub.s32 %v1406, %v1500
    %v1502 = vrot.slane %v1037, %v1501
    %v1503 = vsel %vm1411, %v1502, %v1498
    %v1504 = vlaneseq
    %v1505 = vshrl.u32 %v1504, 7
    %v1506 = vsub.s32 %v1413, %v1505
    %v1507 = vrot.slane %v1040, %v1506
    %v1508 = vsel %vm1418, %v1507, %v1503
    %v1509 = vlaneseq
    %v1510 = vshrl.u32 %v1509, 7
    %v1511 = vsub.s32 %v1420, %v1510
    %v1512 = vrot.slane %v1043, %v1511
    %v1513 = vsel %vm1425, %v1512, %v1508
    %v1514 = vlaneseq
    %v1515 = vshrl.u32 %v1514, 7
    %v1516 = vsub.s32 %v1427, %v1515
    %v1517 = vrot.slane %v1046, %v1516
    %v1518 = vsel %vm1432, %v1517, %v1513
    %v1519 = vlaneseq
    %v1520 = vshrl.u32 %v1519, 7
    %v1521 = vsub.s32 %v1434, %v1520
    %v1522 = vrot.slane %v1049, %v1521
    %v1523 = vsel %vm1439, %v1522, %v1518
    %v1524 = vlaneseq
    %v1525 = vshrl.u32 %v1524, 7
    %v1526 = vsub.s32 %v1441, %v1525
    %v1527 = vrot.slane %v1052, %v1526
    %v1528 = vsel %vm1446, %v1527, %v1523
    %v1529 = vlaneseq
    %v1530 = vshrl.u32 %v1529, 7
    %v1531 = vsub.s32 %v1448, %v1530
    %v1532 = vrot.slane %v1055, %v1531
    %v1533 = vsel %vm1453, %v1532, %v1528
    %v1534 = vlaneseq
    %v1535 = vshrl.u32 %v1534, 7
    %v1536 = vsub.s32 %v1345, %v1535
    %v1537 = vrot.slane %v1058, %v1536
    %v1538 = vlaneseq
    %v1539 = vshrl.u32 %v1538, 7
    %v1540 = vsub.s32 %v1350, %v1539
    %v1541 = vrot.slane %v1061, %v1540
    %v1542 = vsel %vm1355, %v1541, %v1537
    %v1543 = vlaneseq
    %v1544 = vshrl.u32 %v1543, 7
    %v1545 = vsub.s32 %v1357, %v1544
    %v1546 = vrot.slane %v1064, %v1545
    %v1547 = vsel %vm1362, %v1546, %v1542
    %v1548 = vlaneseq
    %v1549 = vshrl.u32 %v1548, 7
    %v1550 = vsub.s32 %v1364, %v1549
    %v1551 = vrot.slane %v1067, %v1550
    %v1552 = vsel %vm1369, %v1551, %v1547
    %v1553 = vlaneseq
    %v1554 = vshrl.u32 %v1553, 7
    %v1555 = vsub.s32 %v1371, %v1554
    %v1556 = vrot.slane %v1070, %v1555
    %v1557 = vsel %vm1376, %v1556, %v1552
    %v1558 = vlaneseq
    %v1559 = vshrl.u32 %v1558, 7
    %v1560 = vsub.s32 %v1378, %v1559
    %v1561 = vrot.slane %v1073, %v1560
    %v1562 = vsel %vm1383, %v1561, %v1557
    %v1563 = vlaneseq
    %v1564 = vshrl.u32 %v1563, 7
    %v1565 = vsub.s32 %v1385, %v1564
    %v1566 = vrot.slane %v1076, %v1565
    %v1567 = vsel %vm1390, %v1566, %v1562
    %v1568 = vlaneseq
    %v1569 = vshrl.u32 %v1568, 7
    %v1570 = vsub.s32 %v1392, %v1569
    %v1571 = vrot.slane %v1079, %v1570
    %v1572 = vsel %vm1397, %v1571, %v1567
    %v1573 = vlaneseq
    %v1574 = vshrl.u32 %v1573, 7
    %v1575 = vsub.s32 %v1399, %v1574
    %v1576 = vrot.slane %v1082, %v1575
    %v1577 = vsel %vm1404, %v1576, %v1572
    %v1578 = vlaneseq
    %v1579 = vshrl.u32 %v1578, 7
    %v1580 = vsub.s32 %v1406, %v1579
    %v1581 = vrot.slane %v1085, %v1580
    %v1582 = vsel %vm1411, %v1581, %v1577
    %v1583 = vlaneseq
    %v1584 = vshrl.u32 %v1583, 7
    %v1585 = vsub.s32 %v1413, %v1584
    %v1586 = vrot.slane %v1088, %v1585
    %v1587 = vsel %vm1418, %v1586, %v1582
    %v1588 = vlaneseq
    %v1589 = vshrl.u32 %v1588, 7
    %v1590 = vsub.s32 %v1420, %v1589
    %v1591 = vrot.slane %v1091, %v1590
    %v1592 = vsel %vm1425, %v1591, %v1587
    %v1593 = vlaneseq
    %v1594 = vshrl.u32 %v1593, 7
    %v1595 = vsub.s32 %v1427, %v1594
    %v1596 = vrot.slane %v1094, %v1595
    %v1597 = vsel %vm1432, %v1596, %v1592
    %v1598 = vlaneseq
    %v1599 = vshrl.u32 %v1598, 7
    %v1600 = vsub.s32 %v1434, %v1599
    %v1601 = vrot.slane %v1097, %v1600
    %v1602 = vsel %vm1439, %v1601, %v1597
    %v1603 = vlaneseq
    %v1604 = vshrl.u32 %v1603, 7
    %v1605 = vsub.s32 %v1441, %v1604
    %v1606 = vrot.slane %v1100, %v1605
    %v1607 = vsel %vm1446, %v1606, %v1602
    %v1608 = vlaneseq
    %v1609 = vshrl.u32 %v1608, 7
    %v1610 = vsub.s32 %v1448, %v1609
    %v1611 = vrot.slane %v1103, %v1610
    %v1612 = vsel %vm1453, %v1611, %v1607
    %v1613 = vlaneseq
    %v1614 = vshrl.u32 %v1613, 7
    %v1615 = vsub.s32 %v1345, %v1614
    %v1616 = vrot.slane %v1106, %v1615
    %v1617 = vlaneseq
    %v1618 = vshrl.u32 %v1617, 7
    %v1619 = vsub.s32 %v1350, %v1618
    %v1620 = vrot.slane %v1109, %v1619
    %v1621 = vsel %vm1355, %v1620, %v1616
    %v1622 = vlaneseq
    %v1623 = vshrl.u32 %v1622, 7
    %v1624 = vsub.s32 %v1357, %v1623
    %v1625 = vrot.slane %v1112, %v1624
    %v1626 = vsel %vm1362, %v1625, %v1621
    %v1627 = vlaneseq
    %v1628 = vshrl.u32 %v1627, 7
    %v1629 = vsub.s32 %v1364, %v1628
    %v1630 = vrot.slane %v1115, %v1629
    %v1631 = vsel %vm1369, %v1630, %v1626
    %v1632 = vlaneseq
    %v1633 = vshrl.u32 %v1632, 7
    %v1634 = vsub.s32 %v1371, %v1633
    %v1635 = vrot.slane %v1118, %v1634
    %v1636 = vsel %vm1376, %v1635, %v1631
    %v1637 = vlaneseq
    %v1638 = vshrl.u32 %v1637, 7
    %v1639 = vsub.s32 %v1378, %v1638
    %v1640 = vrot.slane %v1121, %v1639
    %v1641 = vsel %vm1383, %v1640, %v1636
    %v1642 = vlaneseq
    %v1643 = vshrl.u32 %v1642, 7
    %v1644 = vsub.s32 %v1385, %v1643
    %v1645 = vrot.slane %v1124, %v1644
    %v1646 = vsel %vm1390, %v1645, %v1641
    %v1647 = vlaneseq
    %v1648 = vshrl.u32 %v1647, 7
    %v1649 = vsub.s32 %v1392, %v1648
    %v1650 = vrot.slane %v1127, %v1649
    %v1651 = vsel %vm1397, %v1650, %v1646
    %v1652 = vlaneseq
    %v1653 = vshrl.u32 %v1652, 7
    %v1654 = vsub.s32 %v1399, %v1653
    %v1655 = vrot.slane %v1130, %v1654
    %v1656 = vsel %vm1404, %v1655, %v1651
    %v1657 = vlaneseq
    %v1658 = vshrl.u32 %v1657, 7
    %v1659 = vsub.s32 %v1406, %v1658
    %v1660 = vrot.slane %v1133, %v1659
    %v1661 = vsel %vm1411, %v1660, %v1656
    %v1662 = vlaneseq
    %v1663 = vshrl.u32 %v1662, 7
    %v1664 = vsub.s32 %v1413, %v1663
    %v1665 = vrot.slane %v1136, %v1664
    %v1666 = vsel %vm1418, %v1665, %v1661
    %v1667 = vlaneseq
    %v1668 = vshrl.u32 %v1667, 7
    %v1669 = vsub.s32 %v1420, %v1668
    %v1670 = vrot.slane %v1139, %v1669
    %v1671 = vsel %vm1425, %v1670, %v1666
    %v1672 = vlaneseq
    %v1673 = vshrl.u32 %v1672, 7
    %v1674 = vsub.s32 %v1427, %v1673
    %v1675 = vrot.slane %v1142, %v1674
    %v1676 = vsel %vm1432, %v1675, %v1671
    %v1677 = vlaneseq
    %v1678 = vshrl.u32 %v1677, 7
    %v1679 = vsub.s32 %v1434, %v1678
    %v1680 = vrot.slane %v1145, %v1679
    %v1681 = vsel %vm1439, %v1680, %v1676
    %v1682 = vlaneseq
    %v1683 = vshrl.u32 %v1682, 7
    %v1684 = vsub.s32 %v1441, %v1683
    %v1685 = vrot.slane %v1148, %v1684
    %v1686 = vsel %vm1446, %v1685, %v1681
    %v1687 = vlaneseq
    %v1688 = vshrl.u32 %v1687, 7
    %v1689 = vsub.s32 %v1448, %v1688
    %v1690 = vrot.slane %v1151, %v1689
    %v1691 = vsel %vm1453, %v1690, %v1686
    %v1692 = vlaneseq
    %v1693 = vshrl.u32 %v1692, 7
    %v1694 = vsub.s32 %v1345, %v1693
    %v1695 = vrot.slane %v1154, %v1694
    %v1696 = vlaneseq
    %v1697 = vshrl.u32 %v1696, 7
    %v1698 = vsub.s32 %v1350, %v1697
    %v1699 = vrot.slane %v1157, %v1698
    %v1700 = vsel %vm1355, %v1699, %v1695
    %v1701 = vlaneseq
    %v1702 = vshrl.u32 %v1701, 7
    %v1703 = vsub.s32 %v1357, %v1702
    %v1704 = vrot.slane %v1160, %v1703
    %v1705 = vsel %vm1362, %v1704, %v1700
    %v1706 = vlaneseq
    %v1707 = vshrl.u32 %v1706, 7
    %v1708 = vsub.s32 %v1364, %v1707
    %v1709 = vrot.slane %v1163, %v1708
    %v1710 = vsel %vm1369, %v1709, %v1705
    %v1711 = vlaneseq
    %v1712 = vshrl.u32 %v1711, 7
    %v1713 = vsub.s32 %v1371, %v1712
    %v1714 = vrot.slane %v1166, %v1713
    %v1715 = vsel %vm1376, %v1714, %v1710
    %v1716 = vlaneseq
    %v1717 = vshrl.u32 %v1716, 7
    %v1718 = vsub.s32 %v1378, %v1717
    %v1719 = vrot.slane %v1169, %v1718
    %v1720 = vsel %vm1383, %v1719, %v1715
    %v1721 = vlaneseq
    %v1722 = vshrl.u32 %v1721, 7
    %v1723 = vsub.s32 %v1385, %v1722
    %v1724 = vrot.slane %v1172, %v1723
    %v1725 = vsel %vm1390, %v1724, %v1720
    %v1726 = vlaneseq
    %v1727 = vshrl.u32 %v1726, 7
    %v1728 = vsub.s32 %v1392, %v1727
    %v1729 = vrot.slane %v1175, %v1728
    %v1730 = vsel %vm1397, %v1729, %v1725
    %v1731 = vlaneseq
    %v1732 = vshrl.u32 %v1731, 7
    %v1733 = vsub.s32 %v1399, %v1732
    %v1734 = vrot.slane %v1178, %v1733
    %v1735 = vsel %vm1404, %v1734, %v1730
    %v1736 = vlaneseq
    %v1737 = vshrl.u32 %v1736, 7
    %v1738 = vsub.s32 %v1406, %v1737
    %v1739 = vrot.slane %v1181, %v1738
    %v1740 = vsel %vm1411, %v1739, %v1735
    %v1741 = vlaneseq
    %v1742 = vshrl.u32 %v1741, 7
    %v1743 = vsub.s32 %v1413, %v1742
    %v1744 = vrot.slane %v1184, %v1743
    %v1745 = vsel %vm1418, %v1744, %v1740
    %v1746 = vlaneseq
    %v1747 = vshrl.u32 %v1746, 7
    %v1748 = vsub.s32 %v1420, %v1747
    %v1749 = vrot.slane %v1187, %v1748
    %v1750 = vsel %vm1425, %v1749, %v1745
    %v1751 = vlaneseq
    %v1752 = vshrl.u32 %v1751, 7
    %v1753 = vsub.s32 %v1427, %v1752
    %v1754 = vrot.slane %v1190, %v1753
    %v1755 = vsel %vm1432, %v1754, %v1750
    %v1756 = vlaneseq
    %v1757 = vshrl.u32 %v1756, 7
    %v1758 = vsub.s32 %v1434, %v1757
    %v1759 = vrot.slane %v1193, %v1758
    %v1760 = vsel %vm1439, %v1759, %v1755
    %v1761 = vlaneseq
    %v1762 = vshrl.u32 %v1761, 7
    %v1763 = vsub.s32 %v1441, %v1762
    %v1764 = vrot.slane %v1196, %v1763
    %v1765 = vsel %vm1446, %v1764, %v1760
    %v1766 = vlaneseq
    %v1767 = vshrl.u32 %v1766, 7
    %v1768 = vsub.s32 %v1448, %v1767
    %v1769 = vrot.slane %v1199, %v1768
    %v1770 = vsel %vm1453, %v1769, %v1765
    %v1771 = vlaneseq
    %v1772 = vshrl.u32 %v1771, 7
    %v1773 = vsub.s32 %v1345, %v1772
    %v1774 = vrot.slane %v1202, %v1773
    %v1775 = vlaneseq
    %v1776 = vshrl.u32 %v1775, 7
    %v1777 = vsub.s32 %v1350, %v1776
    %v1778 = vrot.slane %v1205, %v1777
    %v1779 = vsel %vm1355, %v1778, %v1774
    %v1780 = vlaneseq
    %v1781 = vshrl.u32 %v1780, 7
    %v1782 = vsub.s32 %v1357, %v1781
    %v1783 = vrot.slane %v1208, %v1782
    %v1784 = vsel %vm1362, %v1783, %v1779
    %v1785 = vlaneseq
    %v1786 = vshrl.u32 %v1785, 7
    %v1787 = vsub.s32 %v1364, %v1786
    %v1788 = vrot.slane %v1211, %v1787
    %v1789 = vsel %vm1369, %v1788, %v1784
    %v1790 = vlaneseq
    %v1791 = vshrl.u32 %v1790, 7
    %v1792 = vsub.s32 %v1371, %v1791
    %v1793 = vrot.slane %v1214, %v1792
    %v1794 = vsel %vm1376, %v1793, %v1789
    %v1795 = vlaneseq
    %v1796 = vshrl.u32 %v1795, 7
    %v1797 = vsub.s32 %v1378, %v1796
    %v1798 = vrot.slane %v1217, %v1797
    %v1799 = vsel %vm1383, %v1798, %v1794
    %v1800 = vlaneseq
    %v1801 = vshrl.u32 %v1800, 7
    %v1802 = vsub.s32 %v1385, %v1801
    %v1803 = vrot.slane %v1220, %v1802
    %v1804 = vsel %vm1390, %v1803, %v1799
    %v1805 = vlaneseq
    %v1806 = vshrl.u32 %v1805, 7
    %v1807 = vsub.s32 %v1392, %v1806
    %v1808 = vrot.slane %v1223, %v1807
    %v1809 = vsel %vm1397, %v1808, %v1804
    %v1810 = vlaneseq
    %v1811 = vshrl.u32 %v1810, 7
    %v1812 = vsub.s32 %v1399, %v1811
    %v1813 = vrot.slane %v1226, %v1812
    %v1814 = vsel %vm1404, %v1813, %v1809
    %v1815 = vlaneseq
    %v1816 = vshrl.u32 %v1815, 7
    %v1817 = vsub.s32 %v1406, %v1816
    %v1818 = vrot.slane %v1229, %v1817
    %v1819 = vsel %vm1411, %v1818, %v1814
    %v1820 = vlaneseq
    %v1821 = vshrl.u32 %v1820, 7
    %v1822 = vsub.s32 %v1413, %v1821
    %v1823 = vrot.slane %v1232, %v1822
    %v1824 = vsel %vm1418, %v1823, %v1819
    %v1825 = vlaneseq
    %v1826 = vshrl.u32 %v1825, 7
    %v1827 = vsub.s32 %v1420, %v1826
    %v1828 = vrot.slane %v1235, %v1827
    %v1829 = vsel %vm1425, %v1828, %v1824
    %v1830 = vlaneseq
    %v1831 = vshrl.u32 %v1830, 7
    %v1832 = vsub.s32 %v1427, %v1831
    %v1833 = vrot.slane %v1238, %v1832
    %v1834 = vsel %vm1432, %v1833, %v1829
    %v1835 = vlaneseq
    %v1836 = vshrl.u32 %v1835, 7
    %v1837 = vsub.s32 %v1434, %v1836
    %v1838 = vrot.slane %v1241, %v1837
    %v1839 = vsel %vm1439, %v1838, %v1834
    %v1840 = vlaneseq
    %v1841 = vshrl.u32 %v1840, 7
    %v1842 = vsub.s32 %v1441, %v1841
    %v1843 = vrot.slane %v1244, %v1842
    %v1844 = vsel %vm1446, %v1843, %v1839
    %v1845 = vlaneseq
    %v1846 = vshrl.u32 %v1845, 7
    %v1847 = vsub.s32 %v1448, %v1846
    %v1848 = vrot.slane %v1247, %v1847
    %v1849 = vsel %vm1453, %v1848, %v1844
    %v1850 = vlaneseq
    %v1851 = vshrl.u32 %v1850, 7
    %v1852 = vsub.s32 %v1345, %v1851
    %v1853 = vrot.slane %v1250, %v1852
    %v1854 = vlaneseq
    %v1855 = vshrl.u32 %v1854, 7
    %v1856 = vsub.s32 %v1350, %v1855
    %v1857 = vrot.slane %v1253, %v1856
    %v1858 = vsel %vm1355, %v1857, %v1853
    %v1859 = vlaneseq
    %v1860 = vshrl.u32 %v1859, 7
    %v1861 = vsub.s32 %v1357, %v1860
    %v1862 = vrot.slane %v1256, %v1861
    %v1863 = vsel %vm1362, %v1862, %v1858
    %v1864 = vlaneseq
    %v1865 = vshrl.u32 %v1864, 7
    %v1866 = vsub.s32 %v1364, %v1865
    %v1867 = vrot.slane %v1259, %v1866
    %v1868 = vsel %vm1369, %v1867, %v1863
    %v1869 = vlaneseq
    %v1870 = vshrl.u32 %v1869, 7
    %v1871 = vsub.s32 %v1371, %v1870
    %v1872 = vrot.slane %v1262, %v1871
    %v1873 = vsel %vm1376, %v1872, %v1868
    %v1874 = vlaneseq
    %v1875 = vshrl.u32 %v1874, 7
    %v1876 = vsub.s32 %v1378, %v1875
    %v1877 = vrot.slane %v1265, %v1876
    %v1878 = vsel %vm1383, %v1877, %v1873
    %v1879 = vlaneseq
    %v1880 = vshrl.u32 %v1879, 7
    %v1881 = vsub.s32 %v1385, %v1880
    %v1882 = vrot.slane %v1268, %v1881
    %v1883 = vsel %vm1390, %v1882, %v1878
    %v1884 = vlaneseq
    %v1885 = vshrl.u32 %v1884, 7
    %v1886 = vsub.s32 %v1392, %v1885
    %v1887 = vrot.slane %v1271, %v1886
    %v1888 = vsel %vm1397, %v1887, %v1883
    %v1889 = vlaneseq
    %v1890 = vshrl.u32 %v1889, 7
    %v1891 = vsub.s32 %v1399, %v1890
    %v1892 = vrot.slane %v1274, %v1891
    %v1893 = vsel %vm1404, %v1892, %v1888
    %v1894 = vlaneseq
    %v1895 = vshrl.u32 %v1894, 7
    %v1896 = vsub.s32 %v1406, %v1895
    %v1897 = vrot.slane %v1277, %v1896
    %v1898 = vsel %vm1411, %v1897, %v1893
    %v1899 = vlaneseq
    %v1900 = vshrl.u32 %v1899, 7
    %v1901 = vsub.s32 %v1413, %v1900
    %v1902 = vrot.slane %v1280, %v1901
    %v1903 = vsel %vm1418, %v1902, %v1898
    %v1904 = vlaneseq
    %v1905 = vshrl.u32 %v1904, 7
    %v1906 = vsub.s32 %v1420, %v1905
    %v1907 = vrot.slane %v1283, %v1906
    %v1908 = vsel %vm1425, %v1907, %v1903
    %v1909 = vlaneseq
    %v1910 = vshrl.u32 %v1909, 7
    %v1911 = vsub.s32 %v1427, %v1910
    %v1912 = vrot.slane %v1286, %v1911
    %v1913 = vsel %vm1432, %v1912, %v1908
    %v1914 = vlaneseq
    %v1915 = vshrl.u32 %v1914, 7
    %v1916 = vsub.s32 %v1434, %v1915
    %v1917 = vrot.slane %v1289, %v1916
    %v1918 = vsel %vm1439, %v1917, %v1913
    %v1919 = vlaneseq
    %v1920 = vshrl.u32 %v1919, 7
    %v1921 = vsub.s32 %v1441, %v1920
    %v1922 = vrot.slane %v1292, %v1921
    %v1923 = vsel %vm1446, %v1922, %v1918
    %v1924 = vlaneseq
    %v1925 = vshrl.u32 %v1924, 7
    %v1926 = vsub.s32 %v1448, %v1925
    %v1927 = vrot.slane %v1295, %v1926
    %v1928 = vsel %vm1453, %v1927, %v1923
    %v1929 = vlaneseq
    %v1930 = vshrl.u32 %v1929, 7
    %v1931 = vsub.s32 %v1345, %v1930
    %v1932 = vrot.slane %v1298, %v1931
    %v1933 = vlaneseq
    %v1934 = vshrl.u32 %v1933, 7
    %v1935 = vsub.s32 %v1350, %v1934
    %v1936 = vrot.slane %v1301, %v1935
    %v1937 = vsel %vm1355, %v1936, %v1932
    %v1938 = vlaneseq
    %v1939 = vshrl.u32 %v1938, 7
    %v1940 = vsub.s32 %v1357, %v1939
    %v1941 = vrot.slane %v1304, %v1940
    %v1942 = vsel %vm1362, %v1941, %v1937
    %v1943 = vlaneseq
    %v1944 = vshrl.u32 %v1943, 7
    %v1945 = vsub.s32 %v1364, %v1944
    %v1946 = vrot.slane %v1307, %v1945
    %v1947 = vsel %vm1369, %v1946, %v1942
    %v1948 = vlaneseq
    %v1949 = vshrl.u32 %v1948, 7
    %v1950 = vsub.s32 %v1371, %v1949
    %v1951 = vrot.slane %v1310, %v1950
    %v1952 = vsel %vm1376, %v1951, %v1947
    %v1953 = vlaneseq
    %v1954 = vshrl.u32 %v1953, 7
    %v1955 = vsub.s32 %v1378, %v1954
    %v1956 = vrot.slane %v1313, %v1955
    %v1957 = vsel %vm1383, %v1956, %v1952
    %v1958 = vlaneseq
    %v1959 = vshrl.u32 %v1958, 7
    %v1960 = vsub.s32 %v1385, %v1959
    %v1961 = vrot.slane %v1316, %v1960
    %v1962 = vsel %vm1390, %v1961, %v1957
    %v1963 = vlaneseq
    %v1964 = vshrl.u32 %v1963, 7
    %v1965 = vsub.s32 %v1392, %v1964
    %v1966 = vrot.slane %v1319, %v1965
    %v1967 = vsel %vm1397, %v1966, %v1962
    %v1968 = vlaneseq
    %v1969 = vshrl.u32 %v1968, 7
    %v1970 = vsub.s32 %v1399, %v1969
    %v1971 = vrot.slane %v1322, %v1970
    %v1972 = vsel %vm1404, %v1971, %v1967
    %v1973 = vlaneseq
    %v1974 = vshrl.u32 %v1973, 7
    %v1975 = vsub.s32 %v1406, %v1974
    %v1976 = vrot.slane %v1325, %v1975
    %v1977 = vsel %vm1411, %v1976, %v1972
    %v1978 = vlaneseq
    %v1979 = vshrl.u32 %v1978, 7
    %v1980 = vsub.s32 %v1413, %v1979
    %v1981 = vrot.slane %v1328, %v1980
    %v1982 = vsel %vm1418, %v1981, %v1977
    %v1983 = vlaneseq
    %v1984 = vshrl.u32 %v1983, 7
    %v1985 = vsub.s32 %v1420, %v1984
    %v1986 = vrot.slane %v1331, %v1985
    %v1987 = vsel %vm1425, %v1986, %v1982
    %v1988 = vlaneseq
    %v1989 = vshrl.u32 %v1988, 7
    %v1990 = vsub.s32 %v1427, %v1989
    %v1991 = vrot.slane %v1334, %v1990
    %v1992 = vsel %vm1432, %v1991, %v1987
    %v1993 = vlaneseq
    %v1994 = vshrl.u32 %v1993, 7
    %v1995 = vsub.s32 %v1434, %v1994
    %v1996 = vrot.slane %v1337, %v1995
    %v1997 = vsel %vm1439, %v1996, %v1992
    %v1998 = vlaneseq
    %v1999 = vshrl.u32 %v1998, 7
    %v2000 = vsub.s32 %v1441, %v1999
    %v2001 = vrot.slane %v1340, %v2000
    %v2002 = vsel %vm1446, %v2001, %v1997
    %v2003 = vlaneseq
    %v2004 = vshrl.u32 %v2003, 7
    %v2005 = vsub.s32 %v1448, %v2004
    %v2006 = vrot.slane %v1343, %v2005
    %v2007 = vsel %vm1453, %v2006, %v2002
    %vm2008 = vcmask 1041409
    %v2009 = vsel %vm2008, %v1533, %v1454
    %vm2010 = vcmask 1042434
    %v2011 = vsel %vm2010, %v1612, %v2009
    %vm2012 = vcmask 1043459
    %v2013 = vsel %vm2012, %v1691, %v2011
    %vm2014 = vcmask 1044484
    %v2015 = vsel %vm2014, %v1770, %v2013
    %vm2016 = vcmask 1045509
    %v2017 = vsel %vm2016, %v1849, %v2015
    %vm2018 = vcmask 1046534
    %v2019 = vsel %vm2018, %v1928, %v2017
    %vm2020 = vcmask 1047559
    %v2021 = vsel %vm2020, %v2007, %v2019
    %v2023 = vmin.f32 %v57, %v2021
    %2024 = vst [vmem:[#allocation2] sm:$0xff] %v2023
    // Predicated region
    $region22: #{tpu_custom_call.1} parent=1 // pred_check
      %p2025 = pneg %p18
    $region23: #{tpu_custom_call.1} parent=1 // pred_check_branch
      %2027 = sbr.rel (%p2025) target = $region25
    $region24: #{tpu_custom_call.1} parent=1 // pred_region
      %v2028 = vld [vmem:[#allocation2] sm:$0xff]
      %v2029 = vmax.f32 %v2028, 0.0
      %v2030 = vmul.f32 %v2029, -0.5
      %v2031 = vmul.f32 %v2030, 1.442695
      %v2032 = vpow.pop %v2031
      %2033 = vst [vmem:[#allocation3] sm:$0xff] %v2032
    $region25: #{tpu_custom_call.1} parent=1 // pred_fallthru
      _
    // Predicated region
    $region26: #{tpu_custom_call.1} parent=1 // pred_check
      _
    $region27: #{tpu_custom_call.1} parent=1 // pred_check_branch
      %2035 = sbr.rel (0) target = $region29
    $region28: #{tpu_custom_call.1} parent=1 // pred_region
      %s2037 = ssub.s32 128, 128
      %2038 = vsyncadd [#allocation4], %s2037
      %s2040 = sshll.u32 [#allocation3], 4
      %s2041 = int_to_ptr.vmem [resolvable:$true] %s2040
      %2043 = dma.vmem_to_hbm [thread:$0]  %s2041, 128, %s4, [#allocation4]
    $region29: #{tpu_custom_call.1} parent=1 // pred_fallthru
      _
    // Predicated region
    $region30: #{tpu_custom_call.1} parent=1 // pred_check
      _
    $region31: #{tpu_custom_call.1} parent=1 // pred_check_branch
      %2045 = sbr.rel (0) target = $region33
    $region32: #{tpu_custom_call.1} parent=1 // pred_region
      %2046 = dma.done [#allocation4], 128
    $region33: #{tpu_custom_call.1} parent=1 // pred_fallthru
      _
    %2047 = vsyncpa [#allocation4], 1

</llo_original>
